<compile_context>
chip_gen: v5e
topology: v5e:2x2
jax: 0.10.0
libtpu: 0.0.40
codegen_flags: <defaults>
</compile_context>

<pallas_src>
import functools

import jax
import jax.numpy as jnp
import numpy as np
from jax.experimental import pallas as pl
from jax.experimental.pallas import tpu as pltpu


# ---------------------------------------------------------------------------
# Pallas kernel: conv1 -> relu -> conv2 -> relu -> pool(4)
#                -> fc1([pooled | fused-embeddings]) -> relu -> fc2 -> relu
#                -> fc3 -> sigmoid        (output written lane-dense)
# ---------------------------------------------------------------------------
def cnn_forward_kernel(
    x_ref,        # (TB, L)          numeric features, f32 (unpadded)
    xcat_ref,     # (TB, n_cat)      categorical indices, int32
    w1_ref,       # (3, 8)           conv1 weight, tap-major, f32 (VPU)
    w2_ref,       # (24, 16)         conv2 weight, rows k*8+c, bf16
    wfc1c_ref,    # (64, H)          fc1 conv block (slot order i*16+c), bf16
    wfc1e_ref,    # (N_total, H)     fc1 cat block: concat_j (emb_j @ W_cat_j^T), bf16
    wfc2_ref,     # (H, H//2)        bf16
    wfc3_ref,     # (1, H//2)        bf16
    bias_ref,     # (5, Wb)          rows: b1(8), b2(16), fc1_b(H), fc2_b(H//2), fc3_b(1)
    out_ref,      # (1, 1, TB)       sigmoid output, batch on lanes, f32
    *, cat_sizes,
):
    TB, L = x_ref.shape
    H = wfc1c_ref.shape[1]
    Hh = wfc2_ref.shape[1]
    NT = wfc1e_ref.shape[0]

    bias = bias_ref[...]
    b1 = bias[0:1, 0:8]
    b2 = bias[1:2, 0:16]
    bf1 = bias[2:3, 0:H]
    bf2 = bias[3:4, 0:Hh]
    bf3 = bias[4:5, 0:1]
    w1 = w1_ref[...]                                   # (3, 8) f32

    # ---- in-kernel zero padding of the sequence (replaces the wrapper pad pass)
    zeros2 = jnp.zeros((TB, 2), jnp.float32)
    xpad = jnp.concatenate([zeros2, x_ref[...], zeros2], axis=1)     # (TB, L+4)
    # taps[d][b, t] = x[b, t + d - 2] for t in [0, L)  (lane slices only)
    taps = [xpad[:, d:d + L][:, :, None] for d in range(5)]          # (TB, L, 1) each

    pos = jax.lax.broadcasted_iota(jnp.int32, (TB, L, 8), 1)

    # ---- conv1 (+ReLU) recomputed per conv2 tap, conv2 as 3 accumulating matmuls.
    # g_k[b, t, :] = relu(conv1)(position t+k-1)  (zero outside [0, L) = conv2 padding)
    acc = None
    for k in range(3):
        g = (taps[k] * w1[0:1, :][None]
             + taps[k + 1] * w1[1:2, :][None]
             + taps[k + 2] * w1[2:3, :][None]
             + b1[None])                                             # (TB, L, 8)
        g = jnp.maximum(g, 0.0)
        if k == 0:
            g = jnp.where(pos >= 1, g, 0.0)          # h1[-1] == 0 (left pad)
        elif k == 2:
            g = jnp.where(pos <= L - 2, g, 0.0)      # h1[L]  == 0 (right pad)
        g = g.reshape(TB * L, 8).astype(jnp.bfloat16)
        p = jnp.dot(g, w2_ref[k * 8:(k + 1) * 8, :],
                    preferred_element_type=jnp.float32)              # (TB*L, 16)
        acc = p if acc is None else acc + p
    h2 = jnp.maximum(acc + b2, 0.0).reshape(TB, L, 16)

    # ---- AdaptiveAvgPool1d(4): equal windows (L % 4 == 0); lane-concat the 4
    # windows then one sublane reduction -> (TB, 64) in slot order i*16 + c.
    win = L // 4
    pooled = jnp.mean(
        jnp.concatenate([h2[:, i * win:(i + 1) * win, :] for i in range(4)],
                        axis=-1), axis=1)                            # (TB, 64)

    # ---- fused embeddings: multi-hot over all tables, folded into fc1 -----------
    idx = xcat_ref[...]                                              # (TB, n_cat) i32
    lane = jax.lax.broadcasted_iota(jnp.int32, (TB, NT), 1)
    mh = jnp.zeros((TB, NT), jnp.float32)
    off = 0
    for j, n in enumerate(cat_sizes):
        mh = mh + (lane == (idx[:, j:j + 1] + off)).astype(jnp.float32)
        off += n

    # ---- fc1 + ReLU (two accumulating matmuls: conv block + embedding block) ----
    z = jnp.dot(pooled.astype(jnp.bfloat16), wfc1c_ref[...],
                preferred_element_type=jnp.float32)
    z = z + jnp.dot(mh.astype(jnp.bfloat16), wfc1e_ref[...],
                    preferred_element_type=jnp.float32)
    z = jnp.maximum(z + bf1, 0.0)                                    # (TB, H)

    # ---- fc2 + ReLU --------------------------------------------------------------
    z = jnp.dot(z.astype(jnp.bfloat16), wfc2_ref[...],
                preferred_element_type=jnp.float32) + bf2
    z = jnp.maximum(z, 0.0)                                          # (TB, Hh)

    # ---- fc3 + sigmoid, lane-dense: (1,Hh) @ (Hh,TB) -> (1,TB), batch on lanes ---
    logits = jnp.dot(wfc3_ref[...], z.astype(jnp.bfloat16).T,
                     preferred_element_type=jnp.float32) + bf3       # (1, TB)
    sig = pl.reciprocal(1.0 + jnp.exp(-logits), approx=True)
    out_ref[...] = sig.reshape(1, 1, TB)


# ---------------------------------------------------------------------------
# One-time weight preparation (hoisted out of the hot path)
# ---------------------------------------------------------------------------
def prepare_params(params, cat_dims, cat_embed_dim, hidden_dim):
    H = hidden_dim
    # conv1: torch (8,1,3) -> tap-major (3,8); stays f32 (used on the VPU).
    w1t = jnp.transpose(params["w1"][:, 0, :]).astype(jnp.float32)
    # conv2: torch (16,8,3) -> (24,16); row (k*8 + c) multiplies h1[t+k-1, c].
    w2f = jnp.transpose(params["w2"], (2, 1, 0)).reshape(24, 16).astype(jnp.bfloat16)
    # fc1 conv block: torch flat index is c*4 + i; kernel pooled slot is i*16 + c.
    fc1_w = params["fc1_w"]
    wfc1_conv = (jnp.transpose(fc1_w[:, :64].reshape(H, 16, 4), (2, 1, 0))
                 .reshape(64, H).astype(jnp.bfloat16))
    # fc1 cat block: fold each embedding table through its fc1 column block so the
    # in-kernel multi-hot matmul reproduces  emb_j[idx_j] @ W_cat_j^T  exactly.
    E = cat_embed_dim
    blocks, off = [], 64
    for col in cat_dims:
        w_j = fc1_w[:, off:off + E].astype(jnp.float32)              # (H, E)
        blocks.append(params["emb"][col].astype(jnp.float32) @ w_j.T)  # (n_j, H)
        off += E
    wfc1_cat = jnp.concatenate(blocks, axis=0).astype(jnp.bfloat16)  # (N_total, H)

    wfc2 = jnp.transpose(params["fc2_w"]).astype(jnp.bfloat16)       # (H, H//2)
    wfc3 = params["fc3_w"].astype(jnp.bfloat16)                      # (1, H//2)

    Wb = max(16, H)
    def row(v):
        v = v.astype(jnp.float32)
        return jnp.pad(v, (0, Wb - v.shape[0]))
    biases = jnp.stack([row(params["b1"]), row(params["b2"]), row(params["fc1_b"]),
                        row(params["fc2_b"]), row(params["fc3_b"])], axis=0)  # (5, Wb)

    return dict(w1t=w1t, w2f=w2f, wfc1_conv=wfc1_conv, wfc1_cat=wfc1_cat,
                wfc2=wfc2, wfc3=wfc3, biases=biases)


# ---------------------------------------------------------------------------
# JAX glue: tile choice, batch padding, pallas_call
# ---------------------------------------------------------------------------
@functools.partial(jax.jit, static_argnames=("cat_sizes", "tile_b_max"))
def cnn_forward(x_numeric, x_categorical, prepped, cat_sizes, tile_b_max=128):
    B, L = x_numeric.shape
    assert L % 4 == 0, "AdaptiveAvgPool1d(4) handled as equal windows"
    n_cat = len(cat_sizes)
    assert x_categorical.shape[1] == n_cat
    N_total = sum(cat_sizes)
    H = prepped["wfc1_conv"].shape[1]
    Hh = prepped["wfc2"].shape[1]

    # Big tile to amortize per-grid-step overhead, but keep >= 2 grid steps when
    # possible so ("parallel",) can use both v7x TensorCores. Always a multiple of 8.
    half = (B + 1) // 2
    tile_b = min(tile_b_max, max(8, ((half + 7) // 8) * 8))
    n_tiles = (B + tile_b - 1) // tile_b
    Bp = n_tiles * tile_b

    x = x_numeric.astype(jnp.float32)
    xc = x_categorical.astype(jnp.int32)
    if Bp != B:                                  # only the ragged last tile is padded
        x = jnp.pad(x, ((0, Bp - B), (0, 0)))
        xc = jnp.pad(xc, ((0, Bp - B), (0, 0)))

    # Advisory cost estimate for XLA's scheduler.
    wbytes = sum(int(np.prod(v.shape)) * v.dtype.itemsize for v in prepped.values())
    mxu_flops = 2 * Bp * (L * 3 * 8 * 16 + 64 * H + N_total * H + H * Hh + Hh)
    vpu_flops = Bp * L * 8 * 3 * 8
    cost = pl.CostEstimate(
        flops=int(mxu_flops + vpu_flops),
        transcendentals=int(Bp),
        bytes_accessed=int(Bp * (L + n_cat + 1) * 4 + wbytes))

    kernel = functools.partial(cnn_forward_kernel, cat_sizes=cat_sizes)
    out = pl.pallas_call(
        kernel,
        out_shape=jax.ShapeDtypeStruct((n_tiles, 1, tile_b), jnp.float32),
        grid=(n_tiles,),
        in_specs=[
            pl.BlockSpec((tile_b, L), lambda i: (i, 0)),              # x
            pl.BlockSpec((tile_b, n_cat), lambda i: (i, 0)),          # cat indices
            pl.BlockSpec((3, 8), lambda i: (0, 0)),                   # conv1 w (resident)
            pl.BlockSpec((24, 16), lambda i: (0, 0)),                 # conv2 w (resident)
            pl.BlockSpec((64, H), lambda i: (0, 0)),                  # fc1 conv block
            pl.BlockSpec((N_total, H), lambda i: (0, 0)),             # fc1 cat block
            pl.BlockSpec((H, Hh), lambda i: (0, 0)),                  # fc2 w
            pl.BlockSpec((1, Hh), lambda i: (0, 0)),                  # fc3 w
            pl.BlockSpec(prepped["biases"].shape, lambda i: (0, 0)),  # biases
        ],
        out_specs=pl.BlockSpec((1, 1, tile_b), lambda i: (i, 0, 0)),  # lane-dense
        compiler_params=pltpu.CompilerParams(
            dimension_semantics=("parallel",),
            vmem_limit_bytes=40 * 1024 * 1024),
        cost_estimate=cost,
    )(x, xc, prepped["w1t"], prepped["w2f"], prepped["wfc1_conv"],
      prepped["wfc1_cat"], prepped["wfc2"], prepped["wfc3"], prepped["biases"])

    return out.reshape(Bp, 1)[:B]


# ---------------------------------------------------------------------------
# Pure-JAX reference (mirrors the PyTorch forward exactly, f32 throughout)
# ---------------------------------------------------------------------------
def reference_forward(x_numeric, x_categorical, params, cat_dims):
    B, L = x_numeric.shape

    def conv1d_same(x, w, b):            # x (B,C,L), w (O,C,3), b (O,)
        xp = jnp.pad(x, ((0, 0), (0, 0), (1, 1)))
        cols = jnp.stack([xp[:, :, k:k + L] for k in range(3)], axis=-1)  # (B,C,L,3)
        return jnp.einsum('bclk,ock->bol', cols, w) + b[None, :, None]

    x = x_numeric[:, None, :]                                            # (B,1,L)
    h1 = jax.nn.relu(conv1d_same(x, params["w1"], params["b1"]))         # (B,8,L)
    h2 = jax.nn.relu(conv1d_same(h1, params["w2"], params["b2"]))        # (B,16,L)
    pooled = h2.reshape(B, 16, 4, L // 4).mean(axis=-1)                  # (B,16,4)
    conv_flat = pooled.reshape(B, 64)
    embeds = [params["emb"][col][x_categorical[:, i]]
              for i, col in enumerate(cat_dims)]
    x_cat = jnp.concatenate(embeds, axis=1)
    z = jnp.concatenate([conv_flat, x_cat], axis=1)
    z = jax.nn.relu(z @ params["fc1_w"].T + params["fc1_b"])
    z = jax.nn.relu(z @ params["fc2_w"].T + params["fc2_b"])
    z = z @ params["fc3_w"].T + params["fc3_b"]
    return jax.nn.sigmoid(z)


# ---------------------------------------------------------------------------
# Deterministic parameter init (shapes per CNNModel.__init__)
# ---------------------------------------------------------------------------
def init_params(key, cat_dims, cat_embed_dim, hidden_dim):
    H = hidden_dim
    cat_total = len(cat_dims) * cat_embed_dim
    final_in = cat_total + 16 * 4
    keys = iter(jax.random.split(key, 32))

    def nrm(shape, scale):
        return scale * jax.random.normal(next(keys), shape, dtype=jnp.float32)

    params = {
        "emb": {col: nrm((n, cat_embed_dim), 0.5) for col, n in cat_dims.items()},
        "w1": nrm((8, 1, 3), 0.3),   "b1": nrm((8,), 0.05),
        "w2": nrm((16, 8, 3), 0.2),  "b2": nrm((16,), 0.05),
        "fc1_w": nrm((H, final_in), 0.15), "fc1_b": nrm((H,), 0.05),
        "fc2_w": nrm((H // 2, H), 0.2),    "fc2_b": nrm((H // 2,), 0.05),
        "fc3_w": nrm((1, H // 2), 0.3),    "fc3_b": nrm((1,), 0.05),
    }
    return params


if __name__ == "__main__":
    B = 16                              # small, but exercises a 2-step batch grid
    num_numeric_features = 16           # sequence length for the 1-D conv path
    cat_dims = {"cat_a": 10, "cat_b": 7, "cat_c": 5}
    cat_embed_dim = 4
    hidden_dim = 32

    root = jax.random.PRNGKey(0)
    k_params, k_x, k_c = jax.random.split(root, 3)
    params = init_params(k_params, cat_dims, cat_embed_dim, hidden_dim)
    prepped = prepare_params(params, cat_dims, cat_embed_dim, hidden_dim)

    x_numeric = jax.random.normal(k_x, (B, num_numeric_features), dtype=jnp.float32)
    maxes = jnp.array([cat_dims[c] for c in cat_dims], dtype=jnp.int32)
    x_categorical = (jax.random.randint(k_c, (B, len(cat_dims)), 0, 10_000,
                                        dtype=jnp.int32) % maxes[None, :])

    cat_sizes = tuple(cat_dims.values())
    out = cnn_forward(x_numeric, x_categorical, prepped, cat_sizes, tile_b_max=128)
    out = jax.block_until_ready(out)

    ref = reference_forward(x_numeric, x_categorical, params, cat_dims)
    assert out.shape == (B, 1)
    # Matmul operands are bf16 (f32 accumulation) -> compare with a loose tolerance.
    np.testing.assert_allclose(np.asarray(out), np.asarray(ref), rtol=0, atol=2e-2)
    print("KERNEL_OK")
</pallas_src>

<mosaic_0001>
module attributes {stable_mosaic.version = 11 : i64} {
  func.func @cnn_forward_kernel(%arg0: i32, %arg1: memref<8x16xf32, #tpu.memory_space<vmem>>, %arg2: memref<8x3xi32, #tpu.memory_space<vmem>>, %arg3: memref<3x8xf32, #tpu.memory_space<vmem>>, %arg4: memref<24x16xbf16, #tpu.memory_space<vmem>>, %arg5: memref<64x32xbf16, #tpu.memory_space<vmem>>, %arg6: memref<22x32xbf16, #tpu.memory_space<vmem>>, %arg7: memref<32x16xbf16, #tpu.memory_space<vmem>>, %arg8: memref<1x16xbf16, #tpu.memory_space<vmem>>, %arg9: memref<5x32xf32, #tpu.memory_space<vmem>>, %arg10: memref<1x1x8xf32, #tpu.memory_space<vmem>>) attributes {dimension_semantics = [#tpu.dimension_semantics<parallel>], iteration_bounds = array<i64: 2>, scalar_prefetch = 0 : i64, scratch_operands = 0 : i64, tpu.core_type = #tpu.core_type<tc>, window_params = [{transform_indices = @transform_0, window_bounds = array<i64: 8, 16>}, {transform_indices = @transform_1, window_bounds = array<i64: 8, 3>}, {pipeline_mode = #tpu.pipeline_mode<synchronous>, transform_indices = @transform_2, window_bounds = array<i64: 3, 8>}, {pipeline_mode = #tpu.pipeline_mode<synchronous>, transform_indices = @transform_3, window_bounds = array<i64: 24, 16>}, {pipeline_mode = #tpu.pipeline_mode<synchronous>, transform_indices = @transform_4, window_bounds = array<i64: 64, 32>}, {pipeline_mode = #tpu.pipeline_mode<synchronous>, transform_indices = @transform_5, window_bounds = array<i64: 22, 32>}, {pipeline_mode = #tpu.pipeline_mode<synchronous>, transform_indices = @transform_6, window_bounds = array<i64: 32, 16>}, {pipeline_mode = #tpu.pipeline_mode<synchronous>, transform_indices = @transform_7, window_bounds = array<i64: 1, 16>}, {pipeline_mode = #tpu.pipeline_mode<synchronous>, transform_indices = @transform_8, window_bounds = array<i64: 5, 32>}, {transform_indices = @transform_9, window_bounds = array<i64: 1, 1, 8>}]} {
    %c0 = arith.constant 0 : index
    %c0_0 = arith.constant 0 : index
    %0 = vector.load %arg9[%c0, %c0_0] : memref<5x32xf32, #tpu.memory_space<vmem>>, vector<5x32xf32>
    %1 = vector.extract_strided_slice %0 {offsets = [0, 0], sizes = [1, 8], strides = [1, 1]} : vector<5x32xf32> to vector<1x8xf32>
    %2 = vector.extract_strided_slice %0 {offsets = [1, 0], sizes = [1, 16], strides = [1, 1]} : vector<5x32xf32> to vector<1x16xf32>
    %3 = vector.extract_strided_slice %0 {offsets = [2, 0], sizes = [1, 32], strides = [1, 1]} : vector<5x32xf32> to vector<1x32xf32>
    %4 = vector.extract_strided_slice %0 {offsets = [3, 0], sizes = [1, 16], strides = [1, 1]} : vector<5x32xf32> to vector<1x16xf32>
    %5 = vector.extract_strided_slice %0 {offsets = [4, 0], sizes = [1, 1], strides = [1, 1]} : vector<5x32xf32> to vector<1x1xf32>
    %c0_1 = arith.constant 0 : index
    %c0_2 = arith.constant 0 : index
    %6 = vector.load %arg3[%c0_1, %c0_2] : memref<3x8xf32, #tpu.memory_space<vmem>>, vector<3x8xf32>
    %cst = arith.constant 0.000000e+00 : f32
    %7 = vector.broadcast %cst : f32 to vector<8x2xf32>
    %c0_3 = arith.constant 0 : index
    %c0_4 = arith.constant 0 : index
    %8 = vector.load %arg1[%c0_3, %c0_4] : memref<8x16xf32, #tpu.memory_space<vmem>>, vector<8x16xf32>
    %9 = tpu.concatenate %7, %8, %7 in 1 : vector<8x2xf32>, vector<8x16xf32>, vector<8x2xf32> -> vector<8x20xf32>
    %10 = vector.extract_strided_slice %9 {offsets = [0, 0], sizes = [8, 16], strides = [1, 1]} : vector<8x20xf32> to vector<8x16xf32>
    %11 = vector.shape_cast %10 : vector<8x16xf32> to vector<8x16x1xf32>
    %12 = vector.extract_strided_slice %9 {offsets = [0, 1], sizes = [8, 16], strides = [1, 1]} : vector<8x20xf32> to vector<8x16xf32>
    %13 = vector.shape_cast %12 : vector<8x16xf32> to vector<8x16x1xf32>
    %14 = vector.extract_strided_slice %9 {offsets = [0, 2], sizes = [8, 16], strides = [1, 1]} : vector<8x20xf32> to vector<8x16xf32>
    %15 = vector.shape_cast %14 : vector<8x16xf32> to vector<8x16x1xf32>
    %16 = vector.extract_strided_slice %9 {offsets = [0, 3], sizes = [8, 16], strides = [1, 1]} : vector<8x20xf32> to vector<8x16xf32>
    %17 = vector.shape_cast %16 : vector<8x16xf32> to vector<8x16x1xf32>
    %18 = vector.extract_strided_slice %9 {offsets = [0, 4], sizes = [8, 16], strides = [1, 1]} : vector<8x20xf32> to vector<8x16xf32>
    %19 = vector.shape_cast %18 : vector<8x16xf32> to vector<8x16x1xf32>
    %20 = tpu.iota {dimensions = array<i32: 1>} : vector<8x16x8xi32>
    %21 = vector.extract_strided_slice %6 {offsets = [0, 0], sizes = [1, 8], strides = [1, 1]} : vector<3x8xf32> to vector<1x8xf32>
    %22 = vector.shape_cast %21 : vector<1x8xf32> to vector<1x1x8xf32>
    %23 = vector.broadcast %11 : vector<8x16x1xf32> to vector<8x16x8xf32>
    %24 = vector.broadcast %22 : vector<1x1x8xf32> to vector<8x16x8xf32>
    %25 = arith.mulf %23, %24 : vector<8x16x8xf32>
    %26 = vector.extract_strided_slice %6 {offsets = [1, 0], sizes = [1, 8], strides = [1, 1]} : vector<3x8xf32> to vector<1x8xf32>
    %27 = vector.shape_cast %26 : vector<1x8xf32> to vector<1x1x8xf32>
    %28 = vector.broadcast %13 : vector<8x16x1xf32> to vector<8x16x8xf32>
    %29 = vector.broadcast %27 : vector<1x1x8xf32> to vector<8x16x8xf32>
    %30 = arith.mulf %28, %29 : vector<8x16x8xf32>
    %31 = arith.addf %25, %30 : vector<8x16x8xf32>
    %32 = vector.extract_strided_slice %6 {offsets = [2, 0], sizes = [1, 8], strides = [1, 1]} : vector<3x8xf32> to vector<1x8xf32>
    %33 = vector.shape_cast %32 : vector<1x8xf32> to vector<1x1x8xf32>
    %34 = vector.broadcast %15 : vector<8x16x1xf32> to vector<8x16x8xf32>
    %35 = vector.broadcast %33 : vector<1x1x8xf32> to vector<8x16x8xf32>
    %36 = arith.mulf %34, %35 : vector<8x16x8xf32>
    %37 = arith.addf %31, %36 : vector<8x16x8xf32>
    %38 = vector.shape_cast %1 : vector<1x8xf32> to vector<1x1x8xf32>
    %39 = vector.broadcast %38 : vector<1x1x8xf32> to vector<8x16x8xf32>
    %40 = arith.addf %37, %39 : vector<8x16x8xf32>
    %cst_5 = arith.constant 0.000000e+00 : f32
    %41 = vector.broadcast %cst_5 : f32 to vector<8x16x8xf32>
    %42 = arith.maximumf %40, %41 : vector<8x16x8xf32>
    %c1_i32 = arith.constant 1 : i32
    %43 = vector.broadcast %c1_i32 : i32 to vector<8x16x8xi32>
    %44 = arith.cmpi sge, %20, %43 : vector<8x16x8xi32>
    %cst_6 = arith.constant 0.000000e+00 : f32
    %45 = vector.broadcast %cst_6 : f32 to vector<8x16x8xf32>
    %46 = arith.select %44, %42, %45 : vector<8x16x8xi1>, vector<8x16x8xf32>
    %47 = vector.shape_cast %46 : vector<8x16x8xf32> to vector<128x8xf32>
    %48 = arith.truncf %47 : vector<128x8xf32> to vector<128x8xbf16>
    %c0_7 = arith.constant 0 : index
    %c0_8 = arith.constant 0 : index
    %49 = vector.load %arg4[%c0_7, %c0_8] : memref<24x16xbf16, #tpu.memory_space<vmem>>, vector<8x16xbf16>
    %cst_9 = arith.constant dense<0.000000e+00> : vector<128x16xf32>
    %50 = tpu.matmul %48, %49, %cst_9 {dimension_numbers = #tpu.dot_dimension_numbers<[1], [0], [0], [1], [0, 0, 1, 1], [], []>} : vector<128x8xbf16>, vector<8x16xbf16>, vector<128x16xf32> -> vector<128x16xf32>
    %51 = vector.extract_strided_slice %6 {offsets = [0, 0], sizes = [1, 8], strides = [1, 1]} : vector<3x8xf32> to vector<1x8xf32>
    %52 = vector.shape_cast %51 : vector<1x8xf32> to vector<1x1x8xf32>
    %53 = vector.broadcast %13 : vector<8x16x1xf32> to vector<8x16x8xf32>
    %54 = vector.broadcast %52 : vector<1x1x8xf32> to vector<8x16x8xf32>
    %55 = arith.mulf %53, %54 : vector<8x16x8xf32>
    %56 = vector.extract_strided_slice %6 {offsets = [1, 0], sizes = [1, 8], strides = [1, 1]} : vector<3x8xf32> to vector<1x8xf32>
    %57 = vector.shape_cast %56 : vector<1x8xf32> to vector<1x1x8xf32>
    %58 = vector.broadcast %15 : vector<8x16x1xf32> to vector<8x16x8xf32>
    %59 = vector.broadcast %57 : vector<1x1x8xf32> to vector<8x16x8xf32>
    %60 = arith.mulf %58, %59 : vector<8x16x8xf32>
    %61 = arith.addf %55, %60 : vector<8x16x8xf32>
    %62 = vector.extract_strided_slice %6 {offsets = [2, 0], sizes = [1, 8], strides = [1, 1]} : vector<3x8xf32> to vector<1x8xf32>
    %63 = vector.shape_cast %62 : vector<1x8xf32> to vector<1x1x8xf32>
    %64 = vector.broadcast %17 : vector<8x16x1xf32> to vector<8x16x8xf32>
    %65 = vector.broadcast %63 : vector<1x1x8xf32> to vector<8x16x8xf32>
    %66 = arith.mulf %64, %65 : vector<8x16x8xf32>
    %67 = arith.addf %61, %66 : vector<8x16x8xf32>
    %68 = vector.shape_cast %1 : vector<1x8xf32> to vector<1x1x8xf32>
    %69 = vector.broadcast %68 : vector<1x1x8xf32> to vector<8x16x8xf32>
    %70 = arith.addf %67, %69 : vector<8x16x8xf32>
    %cst_10 = arith.constant 0.000000e+00 : f32
    %71 = vector.broadcast %cst_10 : f32 to vector<8x16x8xf32>
    %72 = arith.maximumf %70, %71 : vector<8x16x8xf32>
    %73 = vector.shape_cast %72 : vector<8x16x8xf32> to vector<128x8xf32>
    %74 = arith.truncf %73 : vector<128x8xf32> to vector<128x8xbf16>
    %c8 = arith.constant 8 : index
    %c0_11 = arith.constant 0 : index
    %75 = vector.load %arg4[%c8, %c0_11] : memref<24x16xbf16, #tpu.memory_space<vmem>>, vector<8x16xbf16>
    %cst_12 = arith.constant dense<0.000000e+00> : vector<128x16xf32>
    %76 = tpu.matmul %74, %75, %cst_12 {dimension_numbers = #tpu.dot_dimension_numbers<[1], [0], [0], [1], [0, 0, 1, 1], [], []>} : vector<128x8xbf16>, vector<8x16xbf16>, vector<128x16xf32> -> vector<128x16xf32>
    %77 = arith.addf %50, %76 : vector<128x16xf32>
    %78 = vector.extract_strided_slice %6 {offsets = [0, 0], sizes = [1, 8], strides = [1, 1]} : vector<3x8xf32> to vector<1x8xf32>
    %79 = vector.shape_cast %78 : vector<1x8xf32> to vector<1x1x8xf32>
    %80 = vector.broadcast %15 : vector<8x16x1xf32> to vector<8x16x8xf32>
    %81 = vector.broadcast %79 : vector<1x1x8xf32> to vector<8x16x8xf32>
    %82 = arith.mulf %80, %81 : vector<8x16x8xf32>
    %83 = vector.extract_strided_slice %6 {offsets = [1, 0], sizes = [1, 8], strides = [1, 1]} : vector<3x8xf32> to vector<1x8xf32>
    %84 = vector.shape_cast %83 : vector<1x8xf32> to vector<1x1x8xf32>
    %85 = vector.broadcast %17 : vector<8x16x1xf32> to vector<8x16x8xf32>
    %86 = vector.broadcast %84 : vector<1x1x8xf32> to vector<8x16x8xf32>
    %87 = arith.mulf %85, %86 : vector<8x16x8xf32>
    %88 = arith.addf %82, %87 : vector<8x16x8xf32>
    %89 = vector.extract_strided_slice %6 {offsets = [2, 0], sizes = [1, 8], strides = [1, 1]} : vector<3x8xf32> to vector<1x8xf32>
    %90 = vector.shape_cast %89 : vector<1x8xf32> to vector<1x1x8xf32>
    %91 = vector.broadcast %19 : vector<8x16x1xf32> to vector<8x16x8xf32>
    %92 = vector.broadcast %90 : vector<1x1x8xf32> to vector<8x16x8xf32>
    %93 = arith.mulf %91, %92 : vector<8x16x8xf32>
    %94 = arith.addf %88, %93 : vector<8x16x8xf32>
    %95 = vector.shape_cast %1 : vector<1x8xf32> to vector<1x1x8xf32>
    %96 = vector.broadcast %95 : vector<1x1x8xf32> to vector<8x16x8xf32>
    %97 = arith.addf %94, %96 : vector<8x16x8xf32>
    %cst_13 = arith.constant 0.000000e+00 : f32
    %98 = vector.broadcast %cst_13 : f32 to vector<8x16x8xf32>
    %99 = arith.maximumf %97, %98 : vector<8x16x8xf32>
    %c14_i32 = arith.constant 14 : i32
    %100 = vector.broadcast %c14_i32 : i32 to vector<8x16x8xi32>
    %101 = arith.cmpi sle, %20, %100 : vector<8x16x8xi32>
    %cst_14 = arith.constant 0.000000e+00 : f32
    %102 = vector.broadcast %cst_14 : f32 to vector<8x16x8xf32>
    %103 = arith.select %101, %99, %102 : vector<8x16x8xi1>, vector<8x16x8xf32>
    %104 = vector.shape_cast %103 : vector<8x16x8xf32> to vector<128x8xf32>
    %105 = arith.truncf %104 : vector<128x8xf32> to vector<128x8xbf16>
    %c16 = arith.constant 16 : index
    %c0_15 = arith.constant 0 : index
    %106 = vector.load %arg4[%c16, %c0_15] : memref<24x16xbf16, #tpu.memory_space<vmem>>, vector<8x16xbf16>
    %cst_16 = arith.constant dense<0.000000e+00> : vector<128x16xf32>
    %107 = tpu.matmul %105, %106, %cst_16 {dimension_numbers = #tpu.dot_dimension_numbers<[1], [0], [0], [1], [0, 0, 1, 1], [], []>} : vector<128x8xbf16>, vector<8x16xbf16>, vector<128x16xf32> -> vector<128x16xf32>
    %108 = arith.addf %77, %107 : vector<128x16xf32>
    %109 = vector.broadcast %2 : vector<1x16xf32> to vector<128x16xf32>
    %110 = arith.addf %108, %109 : vector<128x16xf32>
    %cst_17 = arith.constant 0.000000e+00 : f32
    %111 = vector.broadcast %cst_17 : f32 to vector<128x16xf32>
    %112 = arith.maximumf %110, %111 : vector<128x16xf32>
    %113 = vector.shape_cast %112 : vector<128x16xf32> to vector<8x16x16xf32>
    %114 = vector.extract_strided_slice %113 {offsets = [0, 0, 0], sizes = [8, 4, 16], strides = [1, 1, 1]} : vector<8x16x16xf32> to vector<8x4x16xf32>
    %115 = vector.extract_strided_slice %113 {offsets = [0, 4, 0], sizes = [8, 4, 16], strides = [1, 1, 1]} : vector<8x16x16xf32> to vector<8x4x16xf32>
    %116 = vector.extract_strided_slice %113 {offsets = [0, 8, 0], sizes = [8, 4, 16], strides = [1, 1, 1]} : vector<8x16x16xf32> to vector<8x4x16xf32>
    %117 = vector.extract_strided_slice %113 {offsets = [0, 12, 0], sizes = [8, 4, 16], strides = [1, 1, 1]} : vector<8x16x16xf32> to vector<8x4x16xf32>
    %118 = tpu.concatenate %114, %115, %116, %117 in 2 : vector<8x4x16xf32>, vector<8x4x16xf32>, vector<8x4x16xf32>, vector<8x4x16xf32> -> vector<8x4x64xf32>
    %cst_18 = arith.constant dense<0.000000e+00> : vector<8x64xf32>
    %119 = vector.multi_reduction <add>, %118, %cst_18 [1] : vector<8x4x64xf32> to vector<8x64xf32>
    %cst_19 = arith.constant 4.000000e+00 : f32
    %120 = vector.broadcast %cst_19 : f32 to vector<8x64xf32>
    %121 = arith.divf %119, %120 : vector<8x64xf32>
    %c0_20 = arith.constant 0 : index
    %c0_21 = arith.constant 0 : index
    %122 = vector.load %arg2[%c0_20, %c0_21] : memref<8x3xi32, #tpu.memory_space<vmem>>, vector<8x3xi32>
    %123 = tpu.iota {dimensions = array<i32: 1>} : vector<8x22xi32>
    %cst_22 = arith.constant 0.000000e+00 : f32
    %124 = vector.broadcast %cst_22 : f32 to vector<8x22xf32>
    %125 = vector.extract_strided_slice %122 {offsets = [0, 0], sizes = [8, 1], strides = [1, 1]} : vector<8x3xi32> to vector<8x1xi32>
    %c0_i32 = arith.constant 0 : i32
    %126 = vector.broadcast %c0_i32 : i32 to vector<8x1xi32>
    %127 = arith.addi %125, %126 : vector<8x1xi32>
    %128 = vector.broadcast %127 : vector<8x1xi32> to vector<8x22xi32>
    %129 = arith.cmpi eq, %123, %128 : vector<8x22xi32>
    %130 = arith.extui %129 : vector<8x22xi1> to vector<8x22xi32>
    %131 = arith.sitofp %130 : vector<8x22xi32> to vector<8x22xf32>
    %132 = arith.addf %124, %131 : vector<8x22xf32>
    %133 = vector.extract_strided_slice %122 {offsets = [0, 1], sizes = [8, 1], strides = [1, 1]} : vector<8x3xi32> to vector<8x1xi32>
    %c10_i32 = arith.constant 10 : i32
    %134 = vector.broadcast %c10_i32 : i32 to vector<8x1xi32>
    %135 = arith.addi %133, %134 : vector<8x1xi32>
    %136 = vector.broadcast %135 : vector<8x1xi32> to vector<8x22xi32>
    %137 = arith.cmpi eq, %123, %136 : vector<8x22xi32>
    %138 = arith.extui %137 : vector<8x22xi1> to vector<8x22xi32>
    %139 = arith.sitofp %138 : vector<8x22xi32> to vector<8x22xf32>
    %140 = arith.addf %132, %139 : vector<8x22xf32>
    %141 = vector.extract_strided_slice %122 {offsets = [0, 2], sizes = [8, 1], strides = [1, 1]} : vector<8x3xi32> to vector<8x1xi32>
    %c17_i32 = arith.constant 17 : i32
    %142 = vector.broadcast %c17_i32 : i32 to vector<8x1xi32>
    %143 = arith.addi %141, %142 : vector<8x1xi32>
    %144 = vector.broadcast %143 : vector<8x1xi32> to vector<8x22xi32>
    %145 = arith.cmpi eq, %123, %144 : vector<8x22xi32>
    %146 = arith.extui %145 : vector<8x22xi1> to vector<8x22xi32>
    %147 = arith.sitofp %146 : vector<8x22xi32> to vector<8x22xf32>
    %148 = arith.addf %140, %147 : vector<8x22xf32>
    %149 = arith.truncf %121 : vector<8x64xf32> to vector<8x64xbf16>
    %c0_23 = arith.constant 0 : index
    %c0_24 = arith.constant 0 : index
    %150 = vector.load %arg5[%c0_23, %c0_24] : memref<64x32xbf16, #tpu.memory_space<vmem>>, vector<64x32xbf16>
    %cst_25 = arith.constant dense<0.000000e+00> : vector<8x32xf32>
    %151 = tpu.matmul %149, %150, %cst_25 {dimension_numbers = #tpu.dot_dimension_numbers<[1], [0], [0], [1], [0, 0, 1, 1], [], []>} : vector<8x64xbf16>, vector<64x32xbf16>, vector<8x32xf32> -> vector<8x32xf32>
    %152 = arith.truncf %148 : vector<8x22xf32> to vector<8x22xbf16>
    %c0_26 = arith.constant 0 : index
    %c0_27 = arith.constant 0 : index
    %153 = vector.load %arg6[%c0_26, %c0_27] : memref<22x32xbf16, #tpu.memory_space<vmem>>, vector<22x32xbf16>
    %cst_28 = arith.constant dense<0.000000e+00> : vector<8x32xf32>
    %154 = tpu.matmul %152, %153, %cst_28 {dimension_numbers = #tpu.dot_dimension_numbers<[1], [0], [0], [1], [0, 0, 1, 1], [], []>} : vector<8x22xbf16>, vector<22x32xbf16>, vector<8x32xf32> -> vector<8x32xf32>
    %155 = arith.addf %151, %154 : vector<8x32xf32>
    %156 = vector.broadcast %3 : vector<1x32xf32> to vector<8x32xf32>
    %157 = arith.addf %155, %156 : vector<8x32xf32>
    %cst_29 = arith.constant 0.000000e+00 : f32
    %158 = vector.broadcast %cst_29 : f32 to vector<8x32xf32>
    %159 = arith.maximumf %157, %158 : vector<8x32xf32>
    %160 = arith.truncf %159 : vector<8x32xf32> to vector<8x32xbf16>
    %c0_30 = arith.constant 0 : index
    %c0_31 = arith.constant 0 : index
    %161 = vector.load %arg7[%c0_30, %c0_31] : memref<32x16xbf16, #tpu.memory_space<vmem>>, vector<32x16xbf16>
    %cst_32 = arith.constant dense<0.000000e+00> : vector<8x16xf32>
    %162 = tpu.matmul %160, %161, %cst_32 {dimension_numbers = #tpu.dot_dimension_numbers<[1], [0], [0], [1], [0, 0, 1, 1], [], []>} : vector<8x32xbf16>, vector<32x16xbf16>, vector<8x16xf32> -> vector<8x16xf32>
    %163 = vector.broadcast %4 : vector<1x16xf32> to vector<8x16xf32>
    %164 = arith.addf %162, %163 : vector<8x16xf32>
    %cst_33 = arith.constant 0.000000e+00 : f32
    %165 = vector.broadcast %cst_33 : f32 to vector<8x16xf32>
    %166 = arith.maximumf %164, %165 : vector<8x16xf32>
    %c0_34 = arith.constant 0 : index
    %c0_35 = arith.constant 0 : index
    %167 = vector.load %arg8[%c0_34, %c0_35] : memref<1x16xbf16, #tpu.memory_space<vmem>>, vector<1x16xbf16>
    %168 = arith.truncf %166 : vector<8x16xf32> to vector<8x16xbf16>
    %169 = tpu.transpose %168, [1, 0] : vector<8x16xbf16> -> vector<16x8xbf16>
    %cst_36 = arith.constant dense<0.000000e+00> : vector<1x8xf32>
    %170 = tpu.matmul %167, %169, %cst_36 {dimension_numbers = #tpu.dot_dimension_numbers<[1], [0], [0], [1], [0, 0, 1, 1], [], []>} : vector<1x16xbf16>, vector<16x8xbf16>, vector<1x8xf32> -> vector<1x8xf32>
    %171 = vector.broadcast %5 : vector<1x1xf32> to vector<1x8xf32>
    %172 = arith.addf %170, %171 : vector<1x8xf32>
    %cst_37 = arith.constant 0.000000e+00 : f32
    %173 = vector.broadcast %cst_37 : f32 to vector<1x8xf32>
    %174 = arith.subf %173, %172 : vector<1x8xf32>
    %175 = math.exp %174 : vector<1x8xf32>
    %cst_38 = arith.constant 1.000000e+00 : f32
    %176 = vector.broadcast %cst_38 : f32 to vector<1x8xf32>
    %177 = arith.addf %176, %175 : vector<1x8xf32>
    %178 = tpu.reciprocal %177 {approx = true} : vector<1x8xf32> -> vector<1x8xf32>
    %179 = vector.shape_cast %178 : vector<1x8xf32> to vector<1x1x8xf32>
    %c0_39 = arith.constant 0 : index
    %c0_40 = arith.constant 0 : index
    %c0_41 = arith.constant 0 : index
    %180 = vector.load %arg10[%c0_39, %c0_40, %c0_41] : memref<1x1x8xf32, #tpu.memory_space<vmem>>, vector<1x1x8xf32>
    tpu.vector_store %arg10[%c0_39, %c0_40, %c0_41], %179 {strides = array<i32>} : memref<1x1x8xf32, #tpu.memory_space<vmem>>, vector<1x1x8xf32>,
    return
  }
  func.func @transform_0(%arg0: i32) -> (i32, i32) {
    %c0_i32 = arith.constant 0 : i32
    %c0_i32_0 = arith.constant 0 : i32
    return %arg0, %c0_i32 : i32, i32
  }
  func.func @transform_1(%arg0: i32) -> (i32, i32) {
    %c0_i32 = arith.constant 0 : i32
    %c0_i32_0 = arith.constant 0 : i32
    return %arg0, %c0_i32 : i32, i32
  }
  func.func @transform_2(%arg0: i32) -> (i32, i32) {
    %c0_i32 = arith.constant 0 : i32
    %c0_i32_0 = arith.constant 0 : i32
    %c0_i32_1 = arith.constant 0 : i32
    return %c0_i32, %c0_i32_0 : i32, i32
  }
  func.func @transform_3(%arg0: i32) -> (i32, i32) {
    %c0_i32 = arith.constant 0 : i32
    %c0_i32_0 = arith.constant 0 : i32
    %c0_i32_1 = arith.constant 0 : i32
    return %c0_i32, %c0_i32_0 : i32, i32
  }
  func.func @transform_4(%arg0: i32) -> (i32, i32) {
    %c0_i32 = arith.constant 0 : i32
    %c0_i32_0 = arith.constant 0 : i32
    %c0_i32_1 = arith.constant 0 : i32
    return %c0_i32, %c0_i32_0 : i32, i32
  }
  func.func @transform_5(%arg0: i32) -> (i32, i32) {
    %c0_i32 = arith.constant 0 : i32
    %c0_i32_0 = arith.constant 0 : i32
    %c0_i32_1 = arith.constant 0 : i32
    return %c0_i32, %c0_i32_0 : i32, i32
  }
  func.func @transform_6(%arg0: i32) -> (i32, i32) {
    %c0_i32 = arith.constant 0 : i32
    %c0_i32_0 = arith.constant 0 : i32
    %c0_i32_1 = arith.constant 0 : i32
    return %c0_i32, %c0_i32_0 : i32, i32
  }
  func.func @transform_7(%arg0: i32) -> (i32, i32) {
    %c0_i32 = arith.constant 0 : i32
    %c0_i32_0 = arith.constant 0 : i32
    %c0_i32_1 = arith.constant 0 : i32
    return %c0_i32, %c0_i32_0 : i32, i32
  }
  func.func @transform_8(%arg0: i32) -> (i32, i32) {
    %c0_i32 = arith.constant 0 : i32
    %c0_i32_0 = arith.constant 0 : i32
    %c0_i32_1 = arith.constant 0 : i32
    return %c0_i32, %c0_i32_0 : i32, i32
  }
  func.func @transform_9(%arg0: i32) -> (i32, i32, i32) {
    %c0_i32 = arith.constant 0 : i32
    %c0_i32_0 = arith.constant 0 : i32
    %c0_i32_1 = arith.constant 0 : i32
    return %arg0, %c0_i32, %c0_i32_0 : i32, i32, i32
  }
}

</mosaic_0001>

<llo_original>
// kernel: cnn_forward.1
$region0: #{cnn_forward.1}
  #allocation0 [shape = 'u32[]', space=smem, size = 0x4, offset = 0x4, fixed_abs, tag = 'smem constant byte address 0x4 - core index']
  #allocation1 [shape = 'u32[72,128]{1,0:T(1,128)}', space=vmem, size = 0x9000, scoped, tag = 'internal scratch']
  %s0 = inlined_call_operand.vmem [shape: f32[16,16], index: 0, kind: input, shape index: {}]
  %s1 = inlined_call_operand.vmem [shape: s32[16,3], index: 1, kind: input, shape index: {}]
  %s2 = inlined_call_operand.vmem [shape: f32[3,8], index: 2, kind: input, shape index: {}]
  %s3 = inlined_call_operand.vmem [shape: bf16[24,16], index: 3, kind: input, shape index: {}]
  %s4 = inlined_call_operand.vmem [shape: bf16[64,32], index: 4, kind: input, shape index: {}]
  %s5 = inlined_call_operand.vmem [shape: bf16[22,32], index: 5, kind: input, shape index: {}]
  %s6 = inlined_call_operand.vmem [shape: bf16[32,16], index: 6, kind: input, shape index: {}]
  %s7 = inlined_call_operand.vmem [shape: bf16[1,16], index: 7, kind: input, shape index: {}]
  %s8 = inlined_call_operand.vmem [shape: f32[5,32], index: 8, kind: input, shape index: {}]
  %s9 = inlined_call_operand.vmem [shape: f32[2,1,8], index: 9, kind: output, shape index: {}]
  %s10 = sld [smem:[#allocation0]]
  $region69: #{cnn_forward.1} parent=0
    _
  %s12 = ssub.s32 1, %s10
  %s13 = scalar_select 0, %s12, %s10
  loop: start=0, step=1, limit=4
  $region2: #{cnn_forward.1} parent=0 // loop_pre_header
    _
  $region3: #{cnn_forward.1} parent=0 // loop_header
    %s15 = sphi 0, %s19
    %p16 = scmp.ge.s32.totalorder %s15, 4
    %s25 = sphi 0, %s27
    %s28 = sphi 0, %s25
    %s29 = sphi 0, %s28
    %s45 = sphi 0, %s29
    %s51 = sphi 0, %s53
    %s54 = sphi 0, %s51
    %s55 = sphi 0, %s54
    %s71 = sphi 0, %s55
    %s75 = sphi 0, %s75
    %s77 = sphi 0, %s75
    %s78 = sphi 0, %s77
    %s92 = sphi 0, %s78
    %s96 = sphi 0, %s96
    %s98 = sphi 0, %s96
    %s99 = sphi 0, %s98
    %s113 = sphi 0, %s99
    %s117 = sphi 0, %s117
    %s119 = sphi 0, %s117
    %s120 = sphi 0, %s119
    %s134 = sphi 0, %s120
    %s138 = sphi 0, %s138
    %s140 = sphi 0, %s138
    %s141 = sphi 0, %s140
    %s155 = sphi 0, %s141
    %s159 = sphi 0, %s159
    %s161 = sphi 0, %s159
    %s162 = sphi 0, %s161
    %s176 = sphi 0, %s162
    %s180 = sphi 0, %s180
    %s182 = sphi 0, %s180
    %s183 = sphi 0, %s182
    %s197 = sphi 0, %s183
    %s201 = sphi 0, %s201
    %s203 = sphi 0, %s201
    %s204 = sphi 0, %s203
    %s218 = sphi 0, %s204
    %s224 = sphi 0, %s226
    %s227 = sphi 0, %s224
    %s228 = sphi 0, %s227
    %s244 = sphi 0, %s228
  $region4: #{cnn_forward.1} parent=0 // loop_header_branch
    %18 = sbr.rel (%p16) target = $region8
  $region5: #{cnn_forward.1} parent=0 // loop_body
    %s20 = ssub.s32 %s15, 1
    %s21 = ssub.s32 %s15, 2
    %s22 = sadd.s32 %s15, 1
    %s23 = ssub.s32 %s15, %s22
    %p24 = scmp.eq.s32.totalorder %s23, 0
    %s26 = sadd.s32 %s25, 1
    %s27 = scalar_select %p24, %s25, %s26
    %p30 = pneg %p24
    %p31 = scmp.eq.s32.totalorder %s15, 1
    %p32 = por %p30, %p31
    %p33 = scmp.ne.s32.totalorder %s25, %s28
    %p34 = scmp.eq.s32.totalorder %s15, 0
    %p35 = por %p33, %p34
    %p36 = scmp.ne.s32.totalorder %s25, %s28
    %p37 = scmp.eq.s32.totalorder %s20, 1
    %p38 = por %p36, %p37
    %p39 = scmp.ne.s32.totalorder %s28, %s29
    %p40 = scmp.eq.s32.totalorder %s20, 0
    %p41 = por %p39, %p40
    %p42 = scmp.ne.s32.totalorder %s28, %s29
    %p43 = scmp.eq.s32.totalorder %s21, 1
    %p44 = por %p42, %p43
    %p46 = scmp.ne.s32.totalorder %s29, %s45
    %p47 = scmp.eq.s32.totalorder %s21, 0
    %p48 = por %p46, %p47
    %s49 = ssub.s32 %s15, %s22
    %p50 = scmp.eq.s32.totalorder %s49, 0
    %s52 = sadd.s32 %s51, 1
    %s53 = scalar_select %p50, %s51, %s52
    %p56 = pneg %p50
    %p57 = scmp.eq.s32.totalorder %s15, 1
    %p58 = por %p56, %p57
    %p59 = scmp.ne.s32.totalorder %s51, %s54
    %p60 = scmp.eq.s32.totalorder %s15, 0
    %p61 = por %p59, %p60
    %p62 = scmp.ne.s32.totalorder %s51, %s54
    %p63 = scmp.eq.s32.totalorder %s20, 1
    %p64 = por %p62, %p63
    %p65 = scmp.ne.s32.totalorder %s54, %s55
    %p66 = scmp.eq.s32.totalorder %s20, 0
    %p67 = por %p65, %p66
    %p68 = scmp.ne.s32.totalorder %s54, %s55
    %p69 = scmp.eq.s32.totalorder %s21, 1
    %p70 = por %p68, %p69
    %p72 = scmp.ne.s32.totalorder %s55, %s71
    %p73 = scmp.eq.s32.totalorder %s21, 0
    %p74 = por %p72, %p73
    %s76 = sadd.s32 %s75, 1
    %p79 = scmp.eq.s32.totalorder %s15, 1
    %p80 = scmp.ne.s32.totalorder %s75, %s77
    %p81 = scmp.eq.s32.totalorder %s15, 0
    %p82 = por %p80, %p81
    %p83 = scmp.ne.s32.totalorder %s75, %s77
    %p84 = scmp.eq.s32.totalorder %s20, 1
    %p85 = por %p83, %p84
    %p86 = scmp.ne.s32.totalorder %s77, %s78
    %p87 = scmp.eq.s32.totalorder %s20, 0
    %p88 = por %p86, %p87
    %p89 = scmp.ne.s32.totalorder %s77, %s78
    %p90 = scmp.eq.s32.totalorder %s21, 1
    %p91 = por %p89, %p90
    %p93 = scmp.ne.s32.totalorder %s78, %s92
    %p94 = scmp.eq.s32.totalorder %s21, 0
    %p95 = por %p93, %p94
    %s97 = sadd.s32 %s96, 1
    %p100 = scmp.eq.s32.totalorder %s15, 1
    %p101 = scmp.ne.s32.totalorder %s96, %s98
    %p102 = scmp.eq.s32.totalorder %s15, 0
    %p103 = por %p101, %p102
    %p104 = scmp.ne.s32.totalorder %s96, %s98
    %p105 = scmp.eq.s32.totalorder %s20, 1
    %p106 = por %p104, %p105
    %p107 = scmp.ne.s32.totalorder %s98, %s99
    %p108 = scmp.eq.s32.totalorder %s20, 0
    %p109 = por %p107, %p108
    %p110 = scmp.ne.s32.totalorder %s98, %s99
    %p111 = scmp.eq.s32.totalorder %s21, 1
    %p112 = por %p110, %p111
    %p114 = scmp.ne.s32.totalorder %s99, %s113
    %p115 = scmp.eq.s32.totalorder %s21, 0
    %p116 = por %p114, %p115
    %s118 = sadd.s32 %s117, 1
    %p121 = scmp.eq.s32.totalorder %s15, 1
    %p122 = scmp.ne.s32.totalorder %s117, %s119
    %p123 = scmp.eq.s32.totalorder %s15, 0
    %p124 = por %p122, %p123
    %p125 = scmp.ne.s32.totalorder %s117, %s119
    %p126 = scmp.eq.s32.totalorder %s20, 1
    %p127 = por %p125, %p126
    %p128 = scmp.ne.s32.totalorder %s119, %s120
    %p129 = scmp.eq.s32.totalorder %s20, 0
    %p130 = por %p128, %p129
    %p131 = scmp.ne.s32.totalorder %s119, %s120
    %p132 = scmp.eq.s32.totalorder %s21, 1
    %p133 = por %p131, %p132
    %p135 = scmp.ne.s32.totalorder %s120, %s134
    %p136 = scmp.eq.s32.totalorder %s21, 0
    %p137 = por %p135, %p136
    %s139 = sadd.s32 %s138, 1
    %p142 = scmp.eq.s32.totalorder %s15, 1
    %p143 = scmp.ne.s32.totalorder %s138, %s140
    %p144 = scmp.eq.s32.totalorder %s15, 0
    %p145 = por %p143, %p144
    %p146 = scmp.ne.s32.totalorder %s138, %s140
    %p147 = scmp.eq.s32.totalorder %s20, 1
    %p148 = por %p146, %p147
    %p149 = scmp.ne.s32.totalorder %s140, %s141
    %p150 = scmp.eq.s32.totalorder %s20, 0
    %p151 = por %p149, %p150
    %p152 = scmp.ne.s32.totalorder %s140, %s141
    %p153 = scmp.eq.s32.totalorder %s21, 1
    %p154 = por %p152, %p153
    %p156 = scmp.ne.s32.totalorder %s141, %s155
    %p157 = scmp.eq.s32.totalorder %s21, 0
    %p158 = por %p156, %p157
    %s160 = sadd.s32 %s159, 1
    %p163 = scmp.eq.s32.totalorder %s15, 1
    %p164 = scmp.ne.s32.totalorder %s159, %s161
    %p165 = scmp.eq.s32.totalorder %s15, 0
    %p166 = por %p164, %p165
    %p167 = scmp.ne.s32.totalorder %s159, %s161
    %p168 = scmp.eq.s32.totalorder %s20, 1
    %p169 = por %p167, %p168
    %p170 = scmp.ne.s32.totalorder %s161, %s162
    %p171 = scmp.eq.s32.totalorder %s20, 0
    %p172 = por %p170, %p171
    %p173 = scmp.ne.s32.totalorder %s161, %s162
    %p174 = scmp.eq.s32.totalorder %s21, 1
    %p175 = por %p173, %p174
    %p177 = scmp.ne.s32.totalorder %s162, %s176
    %p178 = scmp.eq.s32.totalorder %s21, 0
    %p179 = por %p177, %p178
    %s181 = sadd.s32 %s180, 1
    %p184 = scmp.eq.s32.totalorder %s15, 1
    %p185 = scmp.ne.s32.totalorder %s180, %s182
    %p186 = scmp.eq.s32.totalorder %s15, 0
    %p187 = por %p185, %p186
    %p188 = scmp.ne.s32.totalorder %s180, %s182
    %p189 = scmp.eq.s32.totalorder %s20, 1
    %p190 = por %p188, %p189
    %p191 = scmp.ne.s32.totalorder %s182, %s183
    %p192 = scmp.eq.s32.totalorder %s20, 0
    %p193 = por %p191, %p192
    %p194 = scmp.ne.s32.totalorder %s182, %s183
    %p195 = scmp.eq.s32.totalorder %s21, 1
    %p196 = por %p194, %p195
    %p198 = scmp.ne.s32.totalorder %s183, %s197
    %p199 = scmp.eq.s32.totalorder %s21, 0
    %p200 = por %p198, %p199
    %s202 = sadd.s32 %s201, 1
    %p205 = scmp.eq.s32.totalorder %s15, 1
    %p206 = scmp.ne.s32.totalorder %s201, %s203
    %p207 = scmp.eq.s32.totalorder %s15, 0
    %p208 = por %p206, %p207
    %p209 = scmp.ne.s32.totalorder %s201, %s203
    %p210 = scmp.eq.s32.totalorder %s20, 1
    %p211 = por %p209, %p210
    %p212 = scmp.ne.s32.totalorder %s203, %s204
    %p213 = scmp.eq.s32.totalorder %s20, 0
    %p214 = por %p212, %p213
    %p215 = scmp.ne.s32.totalorder %s203, %s204
    %p216 = scmp.eq.s32.totalorder %s21, 1
    %p217 = por %p215, %p216
    %p219 = scmp.ne.s32.totalorder %s204, %s218
    %p220 = scmp.eq.s32.totalorder %s21, 0
    %p221 = por %p219, %p220
    %s222 = ssub.s32 %s15, %s22
    %p223 = scmp.eq.s32.totalorder %s222, 0
    %s225 = sadd.s32 %s224, 1
    %s226 = scalar_select %p223, %s224, %s225
    %p229 = pneg %p223
    %p230 = scmp.eq.s32.totalorder %s15, 1
    %p231 = por %p229, %p230
    %p232 = scmp.ne.s32.totalorder %s224, %s227
    %p233 = scmp.eq.s32.totalorder %s15, 0
    %p234 = por %p232, %p233
    %p235 = scmp.ne.s32.totalorder %s224, %s227
    %p236 = scmp.eq.s32.totalorder %s20, 1
    %p237 = por %p235, %p236
    %p238 = scmp.ne.s32.totalorder %s227, %s228
    %p239 = scmp.eq.s32.totalorder %s20, 0
    %p240 = por %p238, %p239
    %p241 = scmp.ne.s32.totalorder %s227, %s228
    %p242 = scmp.eq.s32.totalorder %s21, 1
    %p243 = por %p241, %p242
    %p245 = scmp.ne.s32.totalorder %s228, %s244
    %p246 = scmp.eq.s32.totalorder %s21, 0
    %p247 = por %p245, %p246
    %p248 = scmp.le.s32.totalorder 1, %s15
    %p249 = scmp.lt.s32.totalorder %s15, 3
    %p250 = pnand %p248, %p249
    %p251 = pneg %p250
    // Predicated region
    $region9: #{cnn_forward.1} parent=5 // pred_check
      _
    $region10: #{cnn_forward.1} parent=5 // pred_check_branch
      %253 = sbr.rel (%p250) target = $region12
    $region11: #{cnn_forward.1} parent=5 // pred_region
      %s254 = ssub.s32 %s15, 1
      // Predicated region
      $region13: #{cnn_forward.1} parent=11 // pred_check
        %p255 = pneg %p88
      $region14: #{cnn_forward.1} parent=11 // pred_check_branch
        %257 = sbr.rel (%p255) target = $region16
      $region15: #{cnn_forward.1} parent=11 // pred_region
        _
      $region16: #{cnn_forward.1} parent=11 // pred_fallthru
        _
      // Predicated region
      $region17: #{cnn_forward.1} parent=11 // pred_check
        %p258 = pneg %p109
      $region18: #{cnn_forward.1} parent=11 // pred_check_branch
        %260 = sbr.rel (%p258) target = $region20
      $region19: #{cnn_forward.1} parent=11 // pred_region
        _
      $region20: #{cnn_forward.1} parent=11 // pred_fallthru
        _
      // Predicated region
      $region21: #{cnn_forward.1} parent=11 // pred_check
        %p261 = pneg %p130
      $region22: #{cnn_forward.1} parent=11 // pred_check_branch
        %263 = sbr.rel (%p261) target = $region24
      $region23: #{cnn_forward.1} parent=11 // pred_region
        _
      $region24: #{cnn_forward.1} parent=11 // pred_fallthru
        _
      // Predicated region
      $region25: #{cnn_forward.1} parent=11 // pred_check
        %p264 = pneg %p151
      $region26: #{cnn_forward.1} parent=11 // pred_check_branch
        %266 = sbr.rel (%p264) target = $region28
      $region27: #{cnn_forward.1} parent=11 // pred_region
        _
      $region28: #{cnn_forward.1} parent=11 // pred_fallthru
        _
      // Predicated region
      $region29: #{cnn_forward.1} parent=11 // pred_check
        %p267 = pneg %p172
      $region30: #{cnn_forward.1} parent=11 // pred_check_branch
        %269 = sbr.rel (%p267) target = $region32
      $region31: #{cnn_forward.1} parent=11 // pred_region
        _
      $region32: #{cnn_forward.1} parent=11 // pred_fallthru
        _
      // Predicated region
      $region33: #{cnn_forward.1} parent=11 // pred_check
        %p270 = pneg %p193
      $region34: #{cnn_forward.1} parent=11 // pred_check_branch
        %272 = sbr.rel (%p270) target = $region36
      $region35: #{cnn_forward.1} parent=11 // pred_region
        _
      $region36: #{cnn_forward.1} parent=11 // pred_fallthru
        _
      // Predicated region
      $region37: #{cnn_forward.1} parent=11 // pred_check
        %p273 = pneg %p214
      $region38: #{cnn_forward.1} parent=11 // pred_check_branch
        %275 = sbr.rel (%p273) target = $region40
      $region39: #{cnn_forward.1} parent=11 // pred_region
        _
      $region40: #{cnn_forward.1} parent=11 // pred_fallthru
        _
    $region12: #{cnn_forward.1} parent=5 // pred_fallthru
      _
    %p276 = scmp.lt.s32.totalorder %s15, 2
    // Predicated region
    $region41: #{cnn_forward.1} parent=5 // pred_check
      %p277 = pneg %p276
    $region42: #{cnn_forward.1} parent=5 // pred_check_branch
      %279 = sbr.rel (%p277) target = $region44
    $region43: #{cnn_forward.1} parent=5 // pred_region
      // Predicated region
      $region45: #{cnn_forward.1} parent=43 // pred_check
        %p280 = pneg %p35
      $region46: #{cnn_forward.1} parent=43 // pred_check_branch
        %282 = sbr.rel (%p280) target = $region48
      $region47: #{cnn_forward.1} parent=43 // pred_region
        %p283 = scmp.lt.s32.totalorder %s15, 1
        %s284 = scalar_select %p283, %s15, 1
        %s285 = smul.addr %s284, 8
        %s286 = scalar_lea.vmem %s0, %s285
      $region48: #{cnn_forward.1} parent=43 // pred_fallthru
        _
      // Predicated region
      $region49: #{cnn_forward.1} parent=43 // pred_check
        %p287 = pneg %p61
      $region50: #{cnn_forward.1} parent=43 // pred_check_branch
        %289 = sbr.rel (%p287) target = $region52
      $region51: #{cnn_forward.1} parent=43 // pred_region
        %p290 = scmp.lt.s32.totalorder %s15, 1
        %s291 = scalar_select %p290, %s15, 1
        %s292 = smul.addr %s291, 8
        %s293 = scalar_lea.vmem %s1, %s292
      $region52: #{cnn_forward.1} parent=43 // pred_fallthru
        _
    $region44: #{cnn_forward.1} parent=5 // pred_fallthru
      _
    %p294 = scmp.le.s32.totalorder 1, %s15
    %p295 = scmp.lt.s32.totalorder %s15, 3
    %p296 = pnand %p294, %p295
    %p297 = pneg %p296
    // Predicated region
    $region53: #{cnn_forward.1} parent=5 // pred_check
      _
    $region54: #{cnn_forward.1} parent=5 // pred_check_branch
      %299 = sbr.rel (%p296) target = $region56
    $region55: #{cnn_forward.1} parent=5 // pred_region
      %s300 = ssub.s32 %s15, 1
      %p301 = scmp.lt.s32.totalorder %s20, 1
      %s302 = scalar_select %p301, %s20, 1
      %s303 = smul.addr %s302, 8
      %s304 = scalar_lea.vmem %s0, %s303
      %p305 = pneg %p41
      %p306 = pneg %p38
      %p307 = scmp.lt.s32.totalorder %s20, 1
      %s308 = scalar_select %p307, %s20, 1
      %s309 = smul.addr %s308, 8
      %s310 = scalar_lea.vmem %s1, %s309
      %p311 = pneg %p67
      %p312 = pneg %p64
      %p313 = pneg %p88
      %p314 = pneg %p85
      %p315 = pneg %p109
      %p316 = pneg %p106
      %p317 = pneg %p130
      %p318 = pneg %p127
      %p319 = pneg %p151
      %p320 = pneg %p148
      %p321 = pneg %p172
      %p322 = pneg %p169
      %p323 = pneg %p193
      %p324 = pneg %p190
      %p325 = pneg %p214
      %p326 = pneg %p211
      %p327 = pneg %p240
      %p328 = pneg %p237
      %p329 = scmp.lt.s32.totalorder %s20, 1
      %s330 = scalar_select %p329, %s20, 1
      %s331 = scalar_lea.vmem %s9, %s330
      %p332 = scmp.lt.s32.totalorder %s20, 1
      %s333 = scalar_select %p332, %s20, 1
      %s334 = smul.addr %s333, 8
      %s335 = scalar_lea.vmem %s0, %s334
      %p336 = scmp.lt.s32.totalorder %s20, 1
      %s337 = scalar_select %p336, %s20, 1
      %s338 = smul.addr %s337, 8
      %s339 = scalar_lea.vmem %s1, %s338
      %p340 = scmp.lt.s32.totalorder %s20, 1
      %s341 = scalar_select %p340, %s20, 1
      %s342 = scalar_lea.vmem %s9, %s341
      %v344 = vld [vmem:[%s8] sm:$0x1f]
      %v345 = vld [vmem:[%s2] sm:$0x7]
      %v346 = vld [vmem:[%s335] sm:$0xff]
      %348 = vrot.lane.b32.xlu0 %v346, 2
      %v349 = vpop.permute.xlu0 %348
      %vm351 = vcmask 15360
      %v352 = vsel %vm351, 0.0, %v349
      %vm353 = vcmask 146432
      %v354 = vsel %vm353, %v352, 0.0
      %v355 = vperm.slane %v354, 0
      %v356 = vlaneseq
      %v357 = vshrl.u32 %v356, 7
      %359 = vset.pattern.permute.xlu0 %v357
      %360 = vperm.xlu0 %359, %v355
      %v361 = vpop.permute.xlu0 %360
      %v362 = vlaneseq
      %v363 = vshrl.u32 %v362, 7
      %v364 = vadd.s32 %v363, 8
      %365 = vset.pattern.permute.xlu0 %v364
      %366 = vperm.xlu0 %365, %v355
      %v367 = vpop.permute.xlu0 %366
      %v368 = vperm.slane %v354, 1
      %v369 = vlaneseq
      %v370 = vshrl.u32 %v369, 7
      %372 = vset.pattern.permute.xlu0 %v370
      %373 = vperm.xlu0 %372, %v368
      %v374 = vpop.permute.xlu0 %373
      %v375 = vlaneseq
      %v376 = vshrl.u32 %v375, 7
      %v377 = vadd.s32 %v376, 8
      %378 = vset.pattern.permute.xlu0 %v377
      %379 = vperm.xlu0 %378, %v368
      %v380 = vpop.permute.xlu0 %379
      %v381 = vperm.slane %v354, 2
      %v382 = vlaneseq
      %v383 = vshrl.u32 %v382, 7
      %385 = vset.pattern.permute.xlu0 %v383
      %386 = vperm.xlu0 %385, %v381
      %v387 = vpop.permute.xlu0 %386
      %v388 = vlaneseq
      %v389 = vshrl.u32 %v388, 7
      %v390 = vadd.s32 %v389, 8
      %391 = vset.pattern.permute.xlu0 %v390
      %392 = vperm.xlu0 %391, %v381
      %v393 = vpop.permute.xlu0 %392
      %v394 = vperm.slane %v354, 3
      %v395 = vlaneseq
      %v396 = vshrl.u32 %v395, 7
      %398 = vset.pattern.permute.xlu0 %v396
      %399 = vperm.xlu0 %398, %v394
      %v400 = vpop.permute.xlu0 %399
      %v401 = vlaneseq
      %v402 = vshrl.u32 %v401, 7
      %v403 = vadd.s32 %v402, 8
      %404 = vset.pattern.permute.xlu0 %v403
      %405 = vperm.xlu0 %404, %v394
      %v406 = vpop.permute.xlu0 %405
      %v407 = vperm.slane %v354, 4
      %v408 = vlaneseq
      %v409 = vshrl.u32 %v408, 7
      %411 = vset.pattern.permute.xlu0 %v409
      %412 = vperm.xlu0 %411, %v407
      %v413 = vpop.permute.xlu0 %412
      %v414 = vlaneseq
      %v415 = vshrl.u32 %v414, 7
      %v416 = vadd.s32 %v415, 8
      %417 = vset.pattern.permute.xlu0 %v416
      %418 = vperm.xlu0 %417, %v407
      %v419 = vpop.permute.xlu0 %418
      %v420 = vperm.slane %v354, 5
      %v421 = vlaneseq
      %v422 = vshrl.u32 %v421, 7
      %424 = vset.pattern.permute.xlu0 %v422
      %425 = vperm.xlu0 %424, %v420
      %v426 = vpop.permute.xlu0 %425
      %v427 = vlaneseq
      %v428 = vshrl.u32 %v427, 7
      %v429 = vadd.s32 %v428, 8
      %430 = vset.pattern.permute.xlu0 %v429
      %431 = vperm.xlu0 %430, %v420
      %v432 = vpop.permute.xlu0 %431
      %v433 = vperm.slane %v354, 6
      %v434 = vlaneseq
      %v435 = vshrl.u32 %v434, 7
      %437 = vset.pattern.permute.xlu0 %v435
      %438 = vperm.xlu0 %437, %v433
      %v439 = vpop.permute.xlu0 %438
      %v440 = vlaneseq
      %v441 = vshrl.u32 %v440, 7
      %v442 = vadd.s32 %v441, 8
      %443 = vset.pattern.permute.xlu0 %v442
      %444 = vperm.xlu0 %443, %v433
      %v445 = vpop.permute.xlu0 %444
      %v446 = vperm.slane %v354, 7
      %v447 = vlaneseq
      %v448 = vshrl.u32 %v447, 7
      %450 = vset.pattern.permute.xlu0 %v448
      %451 = vperm.xlu0 %450, %v446
      %v452 = vpop.permute.xlu0 %451
      %v453 = vlaneseq
      %v454 = vshrl.u32 %v453, 7
      %v455 = vadd.s32 %v454, 8
      %456 = vset.pattern.permute.xlu0 %v455
      %457 = vperm.xlu0 %456, %v446
      %v458 = vpop.permute.xlu0 %457
      %v459 = vlaneseq
      %v460 = vshrl.u32 %v459, 7
      %v461 = vadd.s32 %v460, 1
      %462 = vset.pattern.permute.xlu0 %v461
      %463 = vperm.xlu0 %462, %v355
      %v464 = vpop.permute.xlu0 %463
      %v465 = vlaneseq
      %v466 = vshrl.u32 %v465, 7
      %v467 = vadd.s32 %v466, 9
      %468 = vset.pattern.permute.xlu0 %v467
      %469 = vperm.xlu0 %468, %v355
      %v470 = vpop.permute.xlu0 %469
      %v471 = vlaneseq
      %v472 = vshrl.u32 %v471, 7
      %v473 = vadd.s32 %v472, 1
      %474 = vset.pattern.permute.xlu0 %v473
      %475 = vperm.xlu0 %474, %v368
      %v476 = vpop.permute.xlu0 %475
      %v477 = vlaneseq
      %v478 = vshrl.u32 %v477, 7
      %v479 = vadd.s32 %v478, 9
      %480 = vset.pattern.permute.xlu0 %v479
      %481 = vperm.xlu0 %480, %v368
      %v482 = vpop.permute.xlu0 %481
      %v483 = vlaneseq
      %v484 = vshrl.u32 %v483, 7
      %v485 = vadd.s32 %v484, 1
      %486 = vset.pattern.permute.xlu0 %v485
      %487 = vperm.xlu0 %486, %v381
      %v488 = vpop.permute.xlu0 %487
      %v489 = vlaneseq
      %v490 = vshrl.u32 %v489, 7
      %v491 = vadd.s32 %v490, 9
      %492 = vset.pattern.permute.xlu0 %v491
      %493 = vperm.xlu0 %492, %v381
      %v494 = vpop.permute.xlu0 %493
      %v495 = vlaneseq
      %v496 = vshrl.u32 %v495, 7
      %v497 = vadd.s32 %v496, 1
      %498 = vset.pattern.permute.xlu0 %v497
      %499 = vperm.xlu0 %498, %v394
      %v500 = vpop.permute.xlu0 %499
      %v501 = vlaneseq
      %v502 = vshrl.u32 %v501, 7
      %v503 = vadd.s32 %v502, 9
      %504 = vset.pattern.permute.xlu0 %v503
      %505 = vperm.xlu0 %504, %v394
      %v506 = vpop.permute.xlu0 %505
      %v507 = vlaneseq
      %v508 = vshrl.u32 %v507, 7
      %v509 = vadd.s32 %v508, 1
      %510 = vset.pattern.permute.xlu0 %v509
      %511 = vperm.xlu0 %510, %v407
      %v512 = vpop.permute.xlu0 %511
      %v513 = vlaneseq
      %v514 = vshrl.u32 %v513, 7
      %v515 = vadd.s32 %v514, 9
      %516 = vset.pattern.permute.xlu0 %v515
      %517 = vperm.xlu0 %516, %v407
      %v518 = vpop.permute.xlu0 %517
      %v519 = vlaneseq
      %v520 = vshrl.u32 %v519, 7
      %v521 = vadd.s32 %v520, 1
      %522 = vset.pattern.permute.xlu0 %v521
      %523 = vperm.xlu0 %522, %v420
      %v524 = vpop.permute.xlu0 %523
      %v525 = vlaneseq
      %v526 = vshrl.u32 %v525, 7
      %v527 = vadd.s32 %v526, 9
      %528 = vset.pattern.permute.xlu0 %v527
      %529 = vperm.xlu0 %528, %v420
      %v530 = vpop.permute.xlu0 %529
      %v531 = vlaneseq
      %v532 = vshrl.u32 %v531, 7
      %v533 = vadd.s32 %v532, 1
      %534 = vset.pattern.permute.xlu0 %v533
      %535 = vperm.xlu0 %534, %v433
      %v536 = vpop.permute.xlu0 %535
      %v537 = vlaneseq
      %v538 = vshrl.u32 %v537, 7
      %v539 = vadd.s32 %v538, 9
      %540 = vset.pattern.permute.xlu0 %v539
      %541 = vperm.xlu0 %540, %v433
      %v542 = vpop.permute.xlu0 %541
      %v543 = vlaneseq
      %v544 = vshrl.u32 %v543, 7
      %v545 = vadd.s32 %v544, 1
      %546 = vset.pattern.permute.xlu0 %v545
      %547 = vperm.xlu0 %546, %v446
      %v548 = vpop.permute.xlu0 %547
      %v549 = vlaneseq
      %v550 = vshrl.u32 %v549, 7
      %v551 = vadd.s32 %v550, 9
      %552 = vset.pattern.permute.xlu0 %v551
      %553 = vperm.xlu0 %552, %v446
      %v554 = vpop.permute.xlu0 %553
      %v555 = vlaneseq
      %v556 = vshrl.u32 %v555, 7
      %v557 = vadd.s32 %v556, 2
      %558 = vset.pattern.permute.xlu0 %v557
      %559 = vperm.xlu0 %558, %v355
      %v560 = vpop.permute.xlu0 %559
      %v561 = vlaneseq
      %v562 = vshrl.u32 %v561, 7
      %v563 = vadd.s32 %v562, 10
      %564 = vset.pattern.permute.xlu0 %v563
      %565 = vperm.xlu0 %564, %v355
      %v566 = vpop.permute.xlu0 %565
      %v567 = vlaneseq
      %v568 = vshrl.u32 %v567, 7
      %v569 = vadd.s32 %v568, 2
      %570 = vset.pattern.permute.xlu0 %v569
      %571 = vperm.xlu0 %570, %v368
      %v572 = vpop.permute.xlu0 %571
      %v573 = vlaneseq
      %v574 = vshrl.u32 %v573, 7
      %v575 = vadd.s32 %v574, 10
      %576 = vset.pattern.permute.xlu0 %v575
      %577 = vperm.xlu0 %576, %v368
      %v578 = vpop.permute.xlu0 %577
      %v579 = vlaneseq
      %v580 = vshrl.u32 %v579, 7
      %v581 = vadd.s32 %v580, 2
      %582 = vset.pattern.permute.xlu0 %v581
      %583 = vperm.xlu0 %582, %v381
      %v584 = vpop.permute.xlu0 %583
      %v585 = vlaneseq
      %v586 = vshrl.u32 %v585, 7
      %v587 = vadd.s32 %v586, 10
      %588 = vset.pattern.permute.xlu0 %v587
      %589 = vperm.xlu0 %588, %v381
      %v590 = vpop.permute.xlu0 %589
      %v591 = vlaneseq
      %v592 = vshrl.u32 %v591, 7
      %v593 = vadd.s32 %v592, 2
      %594 = vset.pattern.permute.xlu0 %v593
      %595 = vperm.xlu0 %594, %v394
      %v596 = vpop.permute.xlu0 %595
      %v597 = vlaneseq
      %v598 = vshrl.u32 %v597, 7
      %v599 = vadd.s32 %v598, 10
      %600 = vset.pattern.permute.xlu0 %v599
      %601 = vperm.xlu0 %600, %v394
      %v602 = vpop.permute.xlu0 %601
      %v603 = vlaneseq
      %v604 = vshrl.u32 %v603, 7
      %v605 = vadd.s32 %v604, 2
      %606 = vset.pattern.permute.xlu0 %v605
      %607 = vperm.xlu0 %606, %v407
      %v608 = vpop.permute.xlu0 %607
      %v609 = vlaneseq
      %v610 = vshrl.u32 %v609, 7
      %v611 = vadd.s32 %v610, 10
      %612 = vset.pattern.permute.xlu0 %v611
      %613 = vperm.xlu0 %612, %v407
      %v614 = vpop.permute.xlu0 %613
      %v615 = vlaneseq
      %v616 = vshrl.u32 %v615, 7
      %v617 = vadd.s32 %v616, 2
      %618 = vset.pattern.permute.xlu0 %v617
      %619 = vperm.xlu0 %618, %v420
      %v620 = vpop.permute.xlu0 %619
      %v621 = vlaneseq
      %v622 = vshrl.u32 %v621, 7
      %v623 = vadd.s32 %v622, 10
      %624 = vset.pattern.permute.xlu0 %v623
      %625 = vperm.xlu0 %624, %v420
      %v626 = vpop.permute.xlu0 %625
      %v627 = vlaneseq
      %v628 = vshrl.u32 %v627, 7
      %v629 = vadd.s32 %v628, 2
      %630 = vset.pattern.permute.xlu0 %v629
      %631 = vperm.xlu0 %630, %v433
      %v632 = vpop.permute.xlu0 %631
      %v633 = vlaneseq
      %v634 = vshrl.u32 %v633, 7
      %v635 = vadd.s32 %v634, 10
      %636 = vset.pattern.permute.xlu0 %v635
      %637 = vperm.xlu0 %636, %v433
      %v638 = vpop.permute.xlu0 %637
      %v639 = vlaneseq
      %v640 = vshrl.u32 %v639, 7
      %v641 = vadd.s32 %v640, 2
      %642 = vset.pattern.permute.xlu0 %v641
      %643 = vperm.xlu0 %642, %v446
      %v644 = vpop.permute.xlu0 %643
      %v645 = vlaneseq
      %v646 = vshrl.u32 %v645, 7
      %v647 = vadd.s32 %v646, 10
      %648 = vset.pattern.permute.xlu0 %v647
      %649 = vperm.xlu0 %648, %v446
      %v650 = vpop.permute.xlu0 %649
      %v651 = vlaneseq
      %v652 = vshrl.u32 %v651, 7
      %v653 = vadd.s32 %v652, 3
      %654 = vset.pattern.permute.xlu0 %v653
      %655 = vperm.xlu0 %654, %v355
      %v656 = vpop.permute.xlu0 %655
      %v657 = vlaneseq
      %v658 = vshrl.u32 %v657, 7
      %v659 = vadd.s32 %v658, 11
      %660 = vset.pattern.permute.xlu0 %v659
      %661 = vperm.xlu0 %660, %v355
      %v662 = vpop.permute.xlu0 %661
      %v663 = vlaneseq
      %v664 = vshrl.u32 %v663, 7
      %v665 = vadd.s32 %v664, 3
      %666 = vset.pattern.permute.xlu0 %v665
      %667 = vperm.xlu0 %666, %v368
      %v668 = vpop.permute.xlu0 %667
      %v669 = vlaneseq
      %v670 = vshrl.u32 %v669, 7
      %v671 = vadd.s32 %v670, 11
      %672 = vset.pattern.permute.xlu0 %v671
      %673 = vperm.xlu0 %672, %v368
      %v674 = vpop.permute.xlu0 %673
      %v675 = vlaneseq
      %v676 = vshrl.u32 %v675, 7
      %v677 = vadd.s32 %v676, 3
      %678 = vset.pattern.permute.xlu0 %v677
      %679 = vperm.xlu0 %678, %v381
      %v680 = vpop.permute.xlu0 %679
      %v681 = vlaneseq
      %v682 = vshrl.u32 %v681, 7
      %v683 = vadd.s32 %v682, 11
      %684 = vset.pattern.permute.xlu0 %v683
      %685 = vperm.xlu0 %684, %v381
      %v686 = vpop.permute.xlu0 %685
      %v687 = vlaneseq
      %v688 = vshrl.u32 %v687, 7
      %v689 = vadd.s32 %v688, 3
      %690 = vset.pattern.permute.xlu0 %v689
      %691 = vperm.xlu0 %690, %v394
      %v692 = vpop.permute.xlu0 %691
      %v693 = vlaneseq
      %v694 = vshrl.u32 %v693, 7
      %v695 = vadd.s32 %v694, 11
      %696 = vset.pattern.permute.xlu0 %v695
      %697 = vperm.xlu0 %696, %v394
      %v698 = vpop.permute.xlu0 %697
      %v699 = vlaneseq
      %v700 = vshrl.u32 %v699, 7
      %v701 = vadd.s32 %v700, 3
      %702 = vset.pattern.permute.xlu0 %v701
      %703 = vperm.xlu0 %702, %v407
      %v704 = vpop.permute.xlu0 %703
      %v705 = vlaneseq
      %v706 = vshrl.u32 %v705, 7
      %v707 = vadd.s32 %v706, 11
      %708 = vset.pattern.permute.xlu0 %v707
      %709 = vperm.xlu0 %708, %v407
      %v710 = vpop.permute.xlu0 %709
      %v711 = vlaneseq
      %v712 = vshrl.u32 %v711, 7
      %v713 = vadd.s32 %v712, 3
      %714 = vset.pattern.permute.xlu0 %v713
      %715 = vperm.xlu0 %714, %v420
      %v716 = vpop.permute.xlu0 %715
      %v717 = vlaneseq
      %v718 = vshrl.u32 %v717, 7
      %v719 = vadd.s32 %v718, 11
      %720 = vset.pattern.permute.xlu0 %v719
      %721 = vperm.xlu0 %720, %v420
      %v722 = vpop.permute.xlu0 %721
      %v723 = vlaneseq
      %v724 = vshrl.u32 %v723, 7
      %v725 = vadd.s32 %v724, 3
      %726 = vset.pattern.permute.xlu0 %v725
      %727 = vperm.xlu0 %726, %v433
      %v728 = vpop.permute.xlu0 %727
      %v729 = vlaneseq
      %v730 = vshrl.u32 %v729, 7
      %v731 = vadd.s32 %v730, 11
      %732 = vset.pattern.permute.xlu0 %v731
      %733 = vperm.xlu0 %732, %v433
      %v734 = vpop.permute.xlu0 %733
      %v735 = vlaneseq
      %v736 = vshrl.u32 %v735, 7
      %v737 = vadd.s32 %v736, 3
      %738 = vset.pattern.permute.xlu0 %v737
      %739 = vperm.xlu0 %738, %v446
      %v740 = vpop.permute.xlu0 %739
      %v741 = vlaneseq
      %v742 = vshrl.u32 %v741, 7
      %v743 = vadd.s32 %v742, 11
      %744 = vset.pattern.permute.xlu0 %v743
      %745 = vperm.xlu0 %744, %v446
      %v746 = vpop.permute.xlu0 %745
      %v747 = vlaneseq
      %v748 = vshrl.u32 %v747, 7
      %v749 = vadd.s32 %v748, 4
      %750 = vset.pattern.permute.xlu0 %v749
      %751 = vperm.xlu0 %750, %v355
      %v752 = vpop.permute.xlu0 %751
      %v753 = vlaneseq
      %v754 = vshrl.u32 %v753, 7
      %v755 = vadd.s32 %v754, 12
      %756 = vset.pattern.permute.xlu0 %v755
      %757 = vperm.xlu0 %756, %v355
      %v758 = vpop.permute.xlu0 %757
      %v759 = vlaneseq
      %v760 = vshrl.u32 %v759, 7
      %v761 = vadd.s32 %v760, 4
      %762 = vset.pattern.permute.xlu0 %v761
      %763 = vperm.xlu0 %762, %v368
      %v764 = vpop.permute.xlu0 %763
      %v765 = vlaneseq
      %v766 = vshrl.u32 %v765, 7
      %v767 = vadd.s32 %v766, 12
      %768 = vset.pattern.permute.xlu0 %v767
      %769 = vperm.xlu0 %768, %v368
      %v770 = vpop.permute.xlu0 %769
      %v771 = vlaneseq
      %v772 = vshrl.u32 %v771, 7
      %v773 = vadd.s32 %v772, 4
      %774 = vset.pattern.permute.xlu0 %v773
      %775 = vperm.xlu0 %774, %v381
      %v776 = vpop.permute.xlu0 %775
      %v777 = vlaneseq
      %v778 = vshrl.u32 %v777, 7
      %v779 = vadd.s32 %v778, 12
      %780 = vset.pattern.permute.xlu0 %v779
      %781 = vperm.xlu0 %780, %v381
      %v782 = vpop.permute.xlu0 %781
      %v783 = vlaneseq
      %v784 = vshrl.u32 %v783, 7
      %v785 = vadd.s32 %v784, 4
      %786 = vset.pattern.permute.xlu0 %v785
      %787 = vperm.xlu0 %786, %v394
      %v788 = vpop.permute.xlu0 %787
      %v789 = vlaneseq
      %v790 = vshrl.u32 %v789, 7
      %v791 = vadd.s32 %v790, 12
      %792 = vset.pattern.permute.xlu0 %v791
      %793 = vperm.xlu0 %792, %v394
      %v794 = vpop.permute.xlu0 %793
      %v795 = vlaneseq
      %v796 = vshrl.u32 %v795, 7
      %v797 = vadd.s32 %v796, 4
      %798 = vset.pattern.permute.xlu0 %v797
      %799 = vperm.xlu0 %798, %v407
      %v800 = vpop.permute.xlu0 %799
      %v801 = vlaneseq
      %v802 = vshrl.u32 %v801, 7
      %v803 = vadd.s32 %v802, 12
      %804 = vset.pattern.permute.xlu0 %v803
      %805 = vperm.xlu0 %804, %v407
      %v806 = vpop.permute.xlu0 %805
      %v807 = vlaneseq
      %v808 = vshrl.u32 %v807, 7
      %v809 = vadd.s32 %v808, 4
      %810 = vset.pattern.permute.xlu0 %v809
      %811 = vperm.xlu0 %810, %v420
      %v812 = vpop.permute.xlu0 %811
      %v813 = vlaneseq
      %v814 = vshrl.u32 %v813, 7
      %v815 = vadd.s32 %v814, 12
      %816 = vset.pattern.permute.xlu0 %v815
      %817 = vperm.xlu0 %816, %v420
      %v818 = vpop.permute.xlu0 %817
      %v819 = vlaneseq
      %v820 = vshrl.u32 %v819, 7
      %v821 = vadd.s32 %v820, 4
      %822 = vset.pattern.permute.xlu0 %v821
      %823 = vperm.xlu0 %822, %v433
      %v824 = vpop.permute.xlu0 %823
      %v825 = vlaneseq
      %v826 = vshrl.u32 %v825, 7
      %v827 = vadd.s32 %v826, 12
      %828 = vset.pattern.permute.xlu0 %v827
      %829 = vperm.xlu0 %828, %v433
      %v830 = vpop.permute.xlu0 %829
      %v831 = vlaneseq
      %v832 = vshrl.u32 %v831, 7
      %v833 = vadd.s32 %v832, 4
      %834 = vset.pattern.permute.xlu0 %v833
      %835 = vperm.xlu0 %834, %v446
      %v836 = vpop.permute.xlu0 %835
      %v837 = vlaneseq
      %v838 = vshrl.u32 %v837, 7
      %v839 = vadd.s32 %v838, 12
      %840 = vset.pattern.permute.xlu0 %v839
      %841 = vperm.xlu0 %840, %v446
      %v842 = vpop.permute.xlu0 %841
      %v843 = vlaneseq
      %v844 = vshrl.u32 %v843, 7
      %v845 = vadd.s32 %v844, 8
      %v846 = vperm.slane %v345, 0
      %v847 = vmul.f32 %v361, %v846
      %v848 = vmul.f32 %v367, %v846
      %v849 = vmul.f32 %v374, %v846
      %v850 = vmul.f32 %v380, %v846
      %v851 = vmul.f32 %v387, %v846
      %v852 = vmul.f32 %v393, %v846
      %v853 = vmul.f32 %v400, %v846
      %v854 = vmul.f32 %v406, %v846
      %v855 = vmul.f32 %v413, %v846
      %v856 = vmul.f32 %v419, %v846
      %v857 = vmul.f32 %v426, %v846
      %v858 = vmul.f32 %v432, %v846
      %v859 = vmul.f32 %v439, %v846
      %v860 = vmul.f32 %v445, %v846
      %v861 = vmul.f32 %v452, %v846
      %v862 = vmul.f32 %v458, %v846
      %v863 = vperm.slane %v345, 1
      %v864 = vmul.f32 %v464, %v863
      %v865 = vmul.f32 %v470, %v863
      %v866 = vmul.f32 %v476, %v863
      %v867 = vmul.f32 %v482, %v863
      %v868 = vmul.f32 %v488, %v863
      %v869 = vmul.f32 %v494, %v863
      %v870 = vmul.f32 %v500, %v863
      %v871 = vmul.f32 %v506, %v863
      %v872 = vmul.f32 %v512, %v863
      %v873 = vmul.f32 %v518, %v863
      %v874 = vmul.f32 %v524, %v863
      %v875 = vmul.f32 %v530, %v863
      %v876 = vmul.f32 %v536, %v863
      %v877 = vmul.f32 %v542, %v863
      %v878 = vmul.f32 %v548, %v863
      %v879 = vmul.f32 %v554, %v863
      %v880 = vadd.f32 %v847, %v864
      %v881 = vadd.f32 %v848, %v865
      %v882 = vadd.f32 %v849, %v866
      %v883 = vadd.f32 %v850, %v867
      %v884 = vadd.f32 %v851, %v868
      %v885 = vadd.f32 %v852, %v869
      %v886 = vadd.f32 %v853, %v870
      %v887 = vadd.f32 %v854, %v871
      %v888 = vadd.f32 %v855, %v872
      %v889 = vadd.f32 %v856, %v873
      %v890 = vadd.f32 %v857, %v874
      %v891 = vadd.f32 %v858, %v875
      %v892 = vadd.f32 %v859, %v876
      %v893 = vadd.f32 %v860, %v877
      %v894 = vadd.f32 %v861, %v878
      %v895 = vadd.f32 %v862, %v879
      %v896 = vperm.slane %v345, 2
      %v897 = vmul.f32 %v560, %v896
      %v898 = vmul.f32 %v566, %v896
      %v899 = vmul.f32 %v572, %v896
      %v900 = vmul.f32 %v578, %v896
      %v901 = vmul.f32 %v584, %v896
      %v902 = vmul.f32 %v590, %v896
      %v903 = vmul.f32 %v596, %v896
      %v904 = vmul.f32 %v602, %v896
      %v905 = vmul.f32 %v608, %v896
      %v906 = vmul.f32 %v614, %v896
      %v907 = vmul.f32 %v620, %v896
      %v908 = vmul.f32 %v626, %v896
      %v909 = vmul.f32 %v632, %v896
      %v910 = vmul.f32 %v638, %v896
      %v911 = vmul.f32 %v644, %v896
      %v912 = vmul.f32 %v650, %v896
      %v913 = vadd.f32 %v880, %v897
      %v914 = vadd.f32 %v881, %v898
      %v915 = vadd.f32 %v882, %v899
      %v916 = vadd.f32 %v883, %v900
      %v917 = vadd.f32 %v884, %v901
      %v918 = vadd.f32 %v885, %v902
      %v919 = vadd.f32 %v886, %v903
      %v920 = vadd.f32 %v887, %v904
      %v921 = vadd.f32 %v888, %v905
      %v922 = vadd.f32 %v889, %v906
      %v923 = vadd.f32 %v890, %v907
      %v924 = vadd.f32 %v891, %v908
      %v925 = vadd.f32 %v892, %v909
      %v926 = vadd.f32 %v893, %v910
      %v927 = vadd.f32 %v894, %v911
      %v928 = vadd.f32 %v895, %v912
      %v929 = vperm.slane %v344, 0
      %v930 = vadd.f32 %v913, %v929
      %v931 = vadd.f32 %v914, %v929
      %v932 = vadd.f32 %v915, %v929
      %v933 = vadd.f32 %v916, %v929
      %v934 = vadd.f32 %v917, %v929
      %v935 = vadd.f32 %v918, %v929
      %v936 = vadd.f32 %v919, %v929
      %v937 = vadd.f32 %v920, %v929
      %v938 = vadd.f32 %v921, %v929
      %v939 = vadd.f32 %v922, %v929
      %v940 = vadd.f32 %v923, %v929
      %v941 = vadd.f32 %v924, %v929
      %v942 = vadd.f32 %v925, %v929
      %v943 = vadd.f32 %v926, %v929
      %v944 = vadd.f32 %v927, %v929
      %v945 = vadd.f32 %v928, %v929
      %v946 = vmax.f32 %v930, 0.0
      %v947 = vmax.f32 %v931, 0.0
      %v948 = vmax.f32 %v932, 0.0
      %v949 = vmax.f32 %v933, 0.0
      %v950 = vmax.f32 %v934, 0.0
      %v951 = vmax.f32 %v935, 0.0
      %v952 = vmax.f32 %v936, 0.0
      %v953 = vmax.f32 %v937, 0.0
      %v954 = vmax.f32 %v938, 0.0
      %v955 = vmax.f32 %v939, 0.0
      %v956 = vmax.f32 %v940, 0.0
      %v957 = vmax.f32 %v941, 0.0
      %v958 = vmax.f32 %v942, 0.0
      %v959 = vmax.f32 %v943, 0.0
      %v960 = vmax.f32 %v944, 0.0
      %v961 = vmax.f32 %v945, 0.0
      %vm962 = vcmp.ge.s32.totalorder %v844, 1
      %vm963 = vcmp.ge.s32.totalorder %v845, 1
      %v964 = vsel %vm962, %v946, 0.0
      %v965 = vsel %vm963, %v947, 0.0
      %v966 = vsel %vm962, %v948, 0.0
      %v967 = vsel %vm963, %v949, 0.0
      %v968 = vsel %vm962, %v950, 0.0
      %v969 = vsel %vm963, %v951, 0.0
      %v970 = vsel %vm962, %v952, 0.0
      %v971 = vsel %vm963, %v953, 0.0
      %v972 = vsel %vm962, %v954, 0.0
      %v973 = vsel %vm963, %v955, 0.0
      %v974 = vsel %vm962, %v956, 0.0
      %v975 = vsel %vm963, %v957, 0.0
      %v976 = vsel %vm962, %v958, 0.0
      %v977 = vsel %vm963, %v959, 0.0
      %v978 = vsel %vm962, %v960, 0.0
      %v979 = vsel %vm963, %v961, 0.0
      %v980 = vpack.c.bf16 %v965, %v964
      %v981 = vpack.c.bf16 %v967, %v966
      %v982 = vpack.c.bf16 %v969, %v968
      %v983 = vpack.c.bf16 %v971, %v970
      %v984 = vpack.c.bf16 %v973, %v972
      %v985 = vpack.c.bf16 %v975, %v974
      %v986 = vpack.c.bf16 %v977, %v976
      %v987 = vpack.c.bf16 %v979, %v978
      %v988 = vld [vmem:[%s3] sm:$0xf]
      %v989 = vmul.f32 %v464, %v846
      %v990 = vmul.f32 %v470, %v846
      %v991 = vmul.f32 %v476, %v846
      %v992 = vmul.f32 %v482, %v846
      %v993 = vmul.f32 %v488, %v846
      %v994 = vmul.f32 %v494, %v846
      %v995 = vmul.f32 %v500, %v846
      %v996 = vmul.f32 %v506, %v846
      %v997 = vmul.f32 %v512, %v846
      %v998 = vmul.f32 %v518, %v846
      %v999 = vmul.f32 %v524, %v846
      %v1000 = vmul.f32 %v530, %v846
      %v1001 = vmul.f32 %v536, %v846
      %v1002 = vmul.f32 %v542, %v846
      %v1003 = vmul.f32 %v548, %v846
      %v1004 = vmul.f32 %v554, %v846
      %v1005 = vmul.f32 %v560, %v863
      %v1006 = vmul.f32 %v566, %v863
      %v1007 = vmul.f32 %v572, %v863
      %v1008 = vmul.f32 %v578, %v863
      %v1009 = vmul.f32 %v584, %v863
      %v1010 = vmul.f32 %v590, %v863
      %v1011 = vmul.f32 %v596, %v863
      %v1012 = vmul.f32 %v602, %v863
      %v1013 = vmul.f32 %v608, %v863
      %v1014 = vmul.f32 %v614, %v863
      %v1015 = vmul.f32 %v620, %v863
      %v1016 = vmul.f32 %v626, %v863
      %v1017 = vmul.f32 %v632, %v863
      %v1018 = vmul.f32 %v638, %v863
      %v1019 = vmul.f32 %v644, %v863
      %v1020 = vmul.f32 %v650, %v863
      %v1021 = vadd.f32 %v989, %v1005
      %v1022 = vadd.f32 %v990, %v1006
      %v1023 = vadd.f32 %v991, %v1007
      %v1024 = vadd.f32 %v992, %v1008
      %v1025 = vadd.f32 %v993, %v1009
      %v1026 = vadd.f32 %v994, %v1010
      %v1027 = vadd.f32 %v995, %v1011
      %v1028 = vadd.f32 %v996, %v1012
      %v1029 = vadd.f32 %v997, %v1013
      %v1030 = vadd.f32 %v998, %v1014
      %v1031 = vadd.f32 %v999, %v1015
      %v1032 = vadd.f32 %v1000, %v1016
      %v1033 = vadd.f32 %v1001, %v1017
      %v1034 = vadd.f32 %v1002, %v1018
      %v1035 = vadd.f32 %v1003, %v1019
      %v1036 = vadd.f32 %v1004, %v1020
      %v1037 = vmul.f32 %v656, %v896
      %v1038 = vmul.f32 %v662, %v896
      %v1039 = vmul.f32 %v668, %v896
      %v1040 = vmul.f32 %v674, %v896
      %v1041 = vmul.f32 %v680, %v896
      %v1042 = vmul.f32 %v686, %v896
      %v1043 = vmul.f32 %v692, %v896
      %v1044 = vmul.f32 %v698, %v896
      %v1045 = vmul.f32 %v704, %v896
      %v1046 = vmul.f32 %v710, %v896
      %v1047 = vmul.f32 %v716, %v896
      %v1048 = vmul.f32 %v722, %v896
      %v1049 = vmul.f32 %v728, %v896
      %v1050 = vmul.f32 %v734, %v896
      %v1051 = vmul.f32 %v740, %v896
      %v1052 = vmul.f32 %v746, %v896
      %v1053 = vadd.f32 %v1021, %v1037
      %v1054 = vadd.f32 %v1022, %v1038
      %v1055 = vadd.f32 %v1023, %v1039
      %v1056 = vadd.f32 %v1024, %v1040
      %v1057 = vadd.f32 %v1025, %v1041
      %v1058 = vadd.f32 %v1026, %v1042
      %v1059 = vadd.f32 %v1027, %v1043
      %v1060 = vadd.f32 %v1028, %v1044
      %v1061 = vadd.f32 %v1029, %v1045
      %v1062 = vadd.f32 %v1030, %v1046
      %v1063 = vadd.f32 %v1031, %v1047
      %v1064 = vadd.f32 %v1032, %v1048
      %v1065 = vadd.f32 %v1033, %v1049
      %v1066 = vadd.f32 %v1034, %v1050
      %v1067 = vadd.f32 %v1035, %v1051
      %v1068 = vadd.f32 %v1036, %v1052
      %v1069 = vadd.f32 %v1053, %v929
      %v1070 = vadd.f32 %v1054, %v929
      %v1071 = vadd.f32 %v1055, %v929
      %v1072 = vadd.f32 %v1056, %v929
      %v1073 = vadd.f32 %v1057, %v929
      %v1074 = vadd.f32 %v1058, %v929
      %v1075 = vadd.f32 %v1059, %v929
      %v1076 = vadd.f32 %v1060, %v929
      %v1077 = vadd.f32 %v1061, %v929
      %v1078 = vadd.f32 %v1062, %v929
      %v1079 = vadd.f32 %v1063, %v929
      %v1080 = vadd.f32 %v1064, %v929
      %v1081 = vadd.f32 %v1065, %v929
      %v1082 = vadd.f32 %v1066, %v929
      %v1083 = vadd.f32 %v1067, %v929
      %v1084 = vadd.f32 %v1068, %v929
      %v1085 = vmax.f32 %v1069, 0.0
      %v1086 = vmax.f32 %v1070, 0.0
      %v1087 = vmax.f32 %v1071, 0.0
      %v1088 = vmax.f32 %v1072, 0.0
      %v1089 = vmax.f32 %v1073, 0.0
      %v1090 = vmax.f32 %v1074, 0.0
      %v1091 = vmax.f32 %v1075, 0.0
      %v1092 = vmax.f32 %v1076, 0.0
      %v1093 = vmax.f32 %v1077, 0.0
      %v1094 = vmax.f32 %v1078, 0.0
      %v1095 = vmax.f32 %v1079, 0.0
      %v1096 = vmax.f32 %v1080, 0.0
      %v1097 = vmax.f32 %v1081, 0.0
      %v1098 = vmax.f32 %v1082, 0.0
      %v1099 = vmax.f32 %v1083, 0.0
      %v1100 = vmax.f32 %v1084, 0.0
      %v1101 = vpack.c.bf16 %v1086, %v1085
      %v1102 = vpack.c.bf16 %v1088, %v1087
      %v1103 = vpack.c.bf16 %v1090, %v1089
      %v1104 = vpack.c.bf16 %v1092, %v1091
      %v1105 = vpack.c.bf16 %v1094, %v1093
      %v1106 = vpack.c.bf16 %v1096, %v1095
      %v1107 = vpack.c.bf16 %v1098, %v1097
      %v1108 = vpack.c.bf16 %v1100, %v1099
      %v1109 = vld [vmem:[%s3 + $0x4] sm:$0xf]
      %vm1110 = vcmask 64512
      %v1112 = vsel %vm1110, %v1101, 0
      %v1115 = vsel %vm1110, %v1102, 0
      %v1118 = vsel %vm1110, %v1103, 0
      %v1121 = vsel %vm1110, %v1104, 0
      %v1124 = vsel %vm1110, %v1105, 0
      %v1127 = vsel %vm1110, %v1106, 0
      %v1130 = vsel %vm1110, %v1107, 0
      %v1133 = vsel %vm1110, %v1108, 0
      %vm1135 = vcmask 1043456
      %v1137 = vsel %vm1135, %v1109, 0
      %1139 = vmatpush.bf16.msra.mxu0 0
      %1140 = vmatpush.bf16.msra.mxu0 0
      %1141 = vmatpush.bf16.msra.mxu0 0
      %1142 = vmatpush.bf16.msra.mxu0 0
      %1143 = vmatpush.bf16.msra.mxu0 0
      %1144 = vmatpush.bf16.msra.mxu0 0
      %1145 = vmatpush.bf16.msra.mxu0 0
      %1146 = vmatpush.bf16.msra.mxu0 %v1137
      %1147 = vmatmul.bf16.gmra.mxu0 %v1112
      %v1148 = vpop.f32.mrf.mxu0
      %v1149 = vadd.f32 0.0, %v1148
      %v1150 = vpop.f32.mrf.mxu0
      %v1151 = vadd.f32 0.0, %v1150
      %1152 = vmatmul.bf16.gmra.mxu0 %v1115
      %v1153 = vpop.f32.mrf.mxu0
      %v1154 = vadd.f32 0.0, %v1153
      %v1155 = vpop.f32.mrf.mxu0
      %v1156 = vadd.f32 0.0, %v1155
      %1157 = vmatmul.bf16.gmra.mxu0 %v1118
      %v1158 = vpop.f32.mrf.mxu0
      %v1159 = vadd.f32 0.0, %v1158
      %v1160 = vpop.f32.mrf.mxu0
      %v1161 = vadd.f32 0.0, %v1160
      %1162 = vmatmul.bf16.gmra.mxu0 %v1121
      %v1163 = vpop.f32.mrf.mxu0
      %v1164 = vadd.f32 0.0, %v1163
      %v1165 = vpop.f32.mrf.mxu0
      %v1166 = vadd.f32 0.0, %v1165
      %1167 = vmatmul.bf16.gmra.mxu0 %v1124
      %v1168 = vpop.f32.mrf.mxu0
      %v1169 = vadd.f32 0.0, %v1168
      %v1170 = vpop.f32.mrf.mxu0
      %v1171 = vadd.f32 0.0, %v1170
      %1172 = vmatmul.bf16.gmra.mxu0 %v1127
      %v1173 = vpop.f32.mrf.mxu0
      %v1174 = vadd.f32 0.0, %v1173
      %v1175 = vpop.f32.mrf.mxu0
      %v1176 = vadd.f32 0.0, %v1175
      %1177 = vmatmul.bf16.gmra.mxu0 %v1130
      %v1178 = vpop.f32.mrf.mxu0
      %v1179 = vadd.f32 0.0, %v1178
      %v1180 = vpop.f32.mrf.mxu0
      %v1181 = vadd.f32 0.0, %v1180
      %1182 = vmatmul.bf16.gmra.mxu0 %v1133
      %v1183 = vpop.f32.mrf.mxu0
      %v1184 = vadd.f32 0.0, %v1183
      %v1185 = vpop.f32.mrf.mxu0
      %v1186 = vadd.f32 0.0, %v1185
      %1187 = vdwg.mxu0
      %v1189 = vsel %vm1110, %v980, 0
      %v1192 = vsel %vm1110, %v981, 0
      %v1195 = vsel %vm1110, %v982, 0
      %v1198 = vsel %vm1110, %v983, 0
      %v1201 = vsel %vm1110, %v984, 0
      %v1204 = vsel %vm1110, %v985, 0
      %v1207 = vsel %vm1110, %v986, 0
      %v1210 = vsel %vm1110, %v987, 0
      %v1213 = vsel %vm1135, %v988, 0
      %1215 = vmatpush.bf16.msra.mxu0 0
      %1216 = vmatpush.bf16.msra.mxu0 0
      %1217 = vmatpush.bf16.msra.mxu0 0
      %1218 = vmatpush.bf16.msra.mxu0 0
      %1219 = vmatpush.bf16.msra.mxu0 0
      %1220 = vmatpush.bf16.msra.mxu0 0
      %1221 = vmatpush.bf16.msra.mxu0 0
      %1222 = vmatpush.bf16.msra.mxu0 %v1213
      %1223 = vmatmul.bf16.gmra.mxu0 %v1189
      %v1224 = vpop.f32.mrf.mxu0
      %v1225 = vadd.f32 %v1149, %v1224
      %v1226 = vpop.f32.mrf.mxu0
      %v1227 = vadd.f32 %v1151, %v1226
      %1228 = vmatmul.bf16.gmra.mxu0 %v1192
      %v1229 = vpop.f32.mrf.mxu0
      %v1230 = vadd.f32 %v1154, %v1229
      %v1231 = vpop.f32.mrf.mxu0
      %v1232 = vadd.f32 %v1156, %v1231
      %1233 = vmatmul.bf16.gmra.mxu0 %v1195
      %v1234 = vpop.f32.mrf.mxu0
      %v1235 = vadd.f32 %v1159, %v1234
      %v1236 = vpop.f32.mrf.mxu0
      %v1237 = vadd.f32 %v1161, %v1236
      %1238 = vmatmul.bf16.gmra.mxu0 %v1198
      %v1239 = vpop.f32.mrf.mxu0
      %v1240 = vadd.f32 %v1164, %v1239
      %v1241 = vpop.f32.mrf.mxu0
      %v1242 = vadd.f32 %v1166, %v1241
      %1243 = vmatmul.bf16.gmra.mxu0 %v1201
      %v1244 = vpop.f32.mrf.mxu0
      %v1245 = vadd.f32 %v1169, %v1244
      %v1246 = vpop.f32.mrf.mxu0
      %v1247 = vadd.f32 %v1171, %v1246
      %1248 = vmatmul.bf16.gmra.mxu0 %v1204
      %v1249 = vpop.f32.mrf.mxu0
      %v1250 = vadd.f32 %v1174, %v1249
      %v1251 = vpop.f32.mrf.mxu0
      %v1252 = vadd.f32 %v1176, %v1251
      %1253 = vmatmul.bf16.gmra.mxu0 %v1207
      %v1254 = vpop.f32.mrf.mxu0
      %v1255 = vadd.f32 %v1179, %v1254
      %v1256 = vpop.f32.mrf.mxu0
      %v1257 = vadd.f32 %v1181, %v1256
      %1258 = vmatmul.bf16.gmra.mxu0 %v1210
      %v1259 = vpop.f32.mrf.mxu0
      %v1260 = vadd.f32 %v1184, %v1259
      %v1261 = vpop.f32.mrf.mxu0
      %v1262 = vadd.f32 %v1186, %v1261
      %1263 = vdwg.mxu0
      %v1264 = vmul.f32 %v560, %v846
      %v1265 = vmul.f32 %v566, %v846
      %v1266 = vmul.f32 %v572, %v846
      %v1267 = vmul.f32 %v578, %v846
      %v1268 = vmul.f32 %v584, %v846
      %v1269 = vmul.f32 %v590, %v846
      %v1270 = vmul.f32 %v596, %v846
      %v1271 = vmul.f32 %v602, %v846
      %v1272 = vmul.f32 %v608, %v846
      %v1273 = vmul.f32 %v614, %v846
      %v1274 = vmul.f32 %v620, %v846
      %v1275 = vmul.f32 %v626, %v846
      %v1276 = vmul.f32 %v632, %v846
      %v1277 = vmul.f32 %v638, %v846
      %v1278 = vmul.f32 %v644, %v846
      %v1279 = vmul.f32 %v650, %v846
      %v1280 = vmul.f32 %v656, %v863
      %v1281 = vmul.f32 %v662, %v863
      %v1282 = vmul.f32 %v668, %v863
      %v1283 = vmul.f32 %v674, %v863
      %v1284 = vmul.f32 %v680, %v863
      %v1285 = vmul.f32 %v686, %v863
      %v1286 = vmul.f32 %v692, %v863
      %v1287 = vmul.f32 %v698, %v863
      %v1288 = vmul.f32 %v704, %v863
      %v1289 = vmul.f32 %v710, %v863
      %v1290 = vmul.f32 %v716, %v863
      %v1291 = vmul.f32 %v722, %v863
      %v1292 = vmul.f32 %v728, %v863
      %v1293 = vmul.f32 %v734, %v863
      %v1294 = vmul.f32 %v740, %v863
      %v1295 = vmul.f32 %v746, %v863
      %v1296 = vadd.f32 %v1264, %v1280
      %v1297 = vadd.f32 %v1265, %v1281
      %v1298 = vadd.f32 %v1266, %v1282
      %v1299 = vadd.f32 %v1267, %v1283
      %v1300 = vadd.f32 %v1268, %v1284
      %v1301 = vadd.f32 %v1269, %v1285
      %v1302 = vadd.f32 %v1270, %v1286
      %v1303 = vadd.f32 %v1271, %v1287
      %v1304 = vadd.f32 %v1272, %v1288
      %v1305 = vadd.f32 %v1273, %v1289
      %v1306 = vadd.f32 %v1274, %v1290
      %v1307 = vadd.f32 %v1275, %v1291
      %v1308 = vadd.f32 %v1276, %v1292
      %v1309 = vadd.f32 %v1277, %v1293
      %v1310 = vadd.f32 %v1278, %v1294
      %v1311 = vadd.f32 %v1279, %v1295
      %v1312 = vmul.f32 %v752, %v896
      %v1313 = vmul.f32 %v758, %v896
      %v1314 = vmul.f32 %v764, %v896
      %v1315 = vmul.f32 %v770, %v896
      %v1316 = vmul.f32 %v776, %v896
      %v1317 = vmul.f32 %v782, %v896
      %v1318 = vmul.f32 %v788, %v896
      %v1319 = vmul.f32 %v794, %v896
      %v1320 = vmul.f32 %v800, %v896
      %v1321 = vmul.f32 %v806, %v896
      %v1322 = vmul.f32 %v812, %v896
      %v1323 = vmul.f32 %v818, %v896
      %v1324 = vmul.f32 %v824, %v896
      %v1325 = vmul.f32 %v830, %v896
      %v1326 = vmul.f32 %v836, %v896
      %v1327 = vmul.f32 %v842, %v896
      %v1328 = vadd.f32 %v1296, %v1312
      %v1329 = vadd.f32 %v1297, %v1313
      %v1330 = vadd.f32 %v1298, %v1314
      %v1331 = vadd.f32 %v1299, %v1315
      %v1332 = vadd.f32 %v1300, %v1316
      %v1333 = vadd.f32 %v1301, %v1317
      %v1334 = vadd.f32 %v1302, %v1318
      %v1335 = vadd.f32 %v1303, %v1319
      %v1336 = vadd.f32 %v1304, %v1320
      %v1337 = vadd.f32 %v1305, %v1321
      %v1338 = vadd.f32 %v1306, %v1322
      %v1339 = vadd.f32 %v1307, %v1323
      %v1340 = vadd.f32 %v1308, %v1324
      %v1341 = vadd.f32 %v1309, %v1325
      %v1342 = vadd.f32 %v1310, %v1326
      %v1343 = vadd.f32 %v1311, %v1327
      %v1344 = vadd.f32 %v1328, %v929
      %v1345 = vadd.f32 %v1329, %v929
      %v1346 = vadd.f32 %v1330, %v929
      %v1347 = vadd.f32 %v1331, %v929
      %v1348 = vadd.f32 %v1332, %v929
      %v1349 = vadd.f32 %v1333, %v929
      %v1350 = vadd.f32 %v1334, %v929
      %v1351 = vadd.f32 %v1335, %v929
      %v1352 = vadd.f32 %v1336, %v929
      %v1353 = vadd.f32 %v1337, %v929
      %v1354 = vadd.f32 %v1338, %v929
      %v1355 = vadd.f32 %v1339, %v929
      %v1356 = vadd.f32 %v1340, %v929
      %v1357 = vadd.f32 %v1341, %v929
      %v1358 = vadd.f32 %v1342, %v929
      %v1359 = vadd.f32 %v1343, %v929
      %v1360 = vmax.f32 %v1344, 0.0
      %v1361 = vmax.f32 %v1345, 0.0
      %v1362 = vmax.f32 %v1346, 0.0
      %v1363 = vmax.f32 %v1347, 0.0
      %v1364 = vmax.f32 %v1348, 0.0
      %v1365 = vmax.f32 %v1349, 0.0
      %v1366 = vmax.f32 %v1350, 0.0
      %v1367 = vmax.f32 %v1351, 0.0
      %v1368 = vmax.f32 %v1352, 0.0
      %v1369 = vmax.f32 %v1353, 0.0
      %v1370 = vmax.f32 %v1354, 0.0
      %v1371 = vmax.f32 %v1355, 0.0
      %v1372 = vmax.f32 %v1356, 0.0
      %v1373 = vmax.f32 %v1357, 0.0
      %v1374 = vmax.f32 %v1358, 0.0
      %v1375 = vmax.f32 %v1359, 0.0
      %vm1376 = vcmp.le.s32.totalorder %v844, 14
      %vm1377 = vcmp.le.s32.totalorder %v845, 14
      %v1378 = vsel %vm1376, %v1360, 0.0
      %v1379 = vsel %vm1377, %v1361, 0.0
      %v1380 = vsel %vm1376, %v1362, 0.0
      %v1381 = vsel %vm1377, %v1363, 0.0
      %v1382 = vsel %vm1376, %v1364, 0.0
      %v1383 = vsel %vm1377, %v1365, 0.0
      %v1384 = vsel %vm1376, %v1366, 0.0
      %v1385 = vsel %vm1377, %v1367, 0.0
      %v1386 = vsel %vm1376, %v1368, 0.0
      %v1387 = vsel %vm1377, %v1369, 0.0
      %v1388 = vsel %vm1376, %v1370, 0.0
      %v1389 = vsel %vm1377, %v1371, 0.0
      %v1390 = vsel %vm1376, %v1372, 0.0
      %v1391 = vsel %vm1377, %v1373, 0.0
      %v1392 = vsel %vm1376, %v1374, 0.0
      %v1393 = vsel %vm1377, %v1375, 0.0
      %v1394 = vpack.c.bf16 %v1379, %v1378
      %v1395 = vpack.c.bf16 %v1381, %v1380
      %v1396 = vpack.c.bf16 %v1383, %v1382
      %v1397 = vpack.c.bf16 %v1385, %v1384
      %v1398 = vpack.c.bf16 %v1387, %v1386
      %v1399 = vpack.c.bf16 %v1389, %v1388
      %v1400 = vpack.c.bf16 %v1391, %v1390
      %v1401 = vpack.c.bf16 %v1393, %v1392
      %v1402 = vld [vmem:[%s3 + $0x8] sm:$0xf]
      %v1404 = vsel %vm1110, %v1394, 0
      %v1407 = vsel %vm1110, %v1395, 0
      %v1410 = vsel %vm1110, %v1396, 0
      %v1413 = vsel %vm1110, %v1397, 0
      %v1416 = vsel %vm1110, %v1398, 0
      %v1419 = vsel %vm1110, %v1399, 0
      %v1422 = vsel %vm1110, %v1400, 0
      %v1425 = vsel %vm1110, %v1401, 0
      %v1428 = vsel %vm1135, %v1402, 0
      %1430 = vmatpush.bf16.msra.mxu0 0
      %1431 = vmatpush.bf16.msra.mxu0 0
      %1432 = vmatpush.bf16.msra.mxu0 0
      %1433 = vmatpush.bf16.msra.mxu0 0
      %1434 = vmatpush.bf16.msra.mxu0 0
      %1435 = vmatpush.bf16.msra.mxu0 0
      %1436 = vmatpush.bf16.msra.mxu0 0
      %1437 = vmatpush.bf16.msra.mxu0 %v1428
      %1438 = vmatmul.bf16.gmra.mxu0 %v1404
      %v1439 = vpop.f32.mrf.mxu0
      %v1440 = vadd.f32 0.0, %v1439
      %v1441 = vpop.f32.mrf.mxu0
      %v1442 = vadd.f32 0.0, %v1441
      %1443 = vmatmul.bf16.gmra.mxu0 %v1407
      %v1444 = vpop.f32.mrf.mxu0
      %v1445 = vadd.f32 0.0, %v1444
      %v1446 = vpop.f32.mrf.mxu0
      %v1447 = vadd.f32 0.0, %v1446
      %1448 = vmatmul.bf16.gmra.mxu0 %v1410
      %v1449 = vpop.f32.mrf.mxu0
      %v1450 = vadd.f32 0.0, %v1449
      %v1451 = vpop.f32.mrf.mxu0
      %v1452 = vadd.f32 0.0, %v1451
      %1453 = vmatmul.bf16.gmra.mxu0 %v1413
      %v1454 = vpop.f32.mrf.mxu0
      %v1455 = vadd.f32 0.0, %v1454
      %v1456 = vpop.f32.mrf.mxu0
      %v1457 = vadd.f32 0.0, %v1456
      %1458 = vmatmul.bf16.gmra.mxu0 %v1416
      %v1459 = vpop.f32.mrf.mxu0
      %v1460 = vadd.f32 0.0, %v1459
      %v1461 = vpop.f32.mrf.mxu0
      %v1462 = vadd.f32 0.0, %v1461
      %1463 = vmatmul.bf16.gmra.mxu0 %v1419
      %v1464 = vpop.f32.mrf.mxu0
      %v1465 = vadd.f32 0.0, %v1464
      %v1466 = vpop.f32.mrf.mxu0
      %v1467 = vadd.f32 0.0, %v1466
      %1468 = vmatmul.bf16.gmra.mxu0 %v1422
      %v1469 = vpop.f32.mrf.mxu0
      %v1470 = vadd.f32 0.0, %v1469
      %v1471 = vpop.f32.mrf.mxu0
      %v1472 = vadd.f32 0.0, %v1471
      %1473 = vmatmul.bf16.gmra.mxu0 %v1425
      %v1474 = vpop.f32.mrf.mxu0
      %v1475 = vadd.f32 0.0, %v1474
      %v1476 = vpop.f32.mrf.mxu0
      %v1477 = vadd.f32 0.0, %v1476
      %1478 = vdwg.mxu0
      %v1479 = vadd.f32 %v1225, %v1440
      %v1480 = vadd.f32 %v1227, %v1442
      %v1481 = vadd.f32 %v1230, %v1445
      %v1482 = vadd.f32 %v1232, %v1447
      %v1483 = vadd.f32 %v1235, %v1450
      %v1484 = vadd.f32 %v1237, %v1452
      %v1485 = vadd.f32 %v1240, %v1455
      %v1486 = vadd.f32 %v1242, %v1457
      %v1487 = vadd.f32 %v1245, %v1460
      %v1488 = vadd.f32 %v1247, %v1462
      %v1489 = vadd.f32 %v1250, %v1465
      %v1490 = vadd.f32 %v1252, %v1467
      %v1491 = vadd.f32 %v1255, %v1470
      %v1492 = vadd.f32 %v1257, %v1472
      %v1493 = vadd.f32 %v1260, %v1475
      %v1494 = vadd.f32 %v1262, %v1477
      %v1495 = vperm.slane %v344, 1
      %v1496 = vadd.f32 %v1479, %v1495
      %v1497 = vadd.f32 %v1480, %v1495
      %v1498 = vadd.f32 %v1481, %v1495
      %v1499 = vadd.f32 %v1482, %v1495
      %v1500 = vadd.f32 %v1483, %v1495
      %v1501 = vadd.f32 %v1484, %v1495
      %v1502 = vadd.f32 %v1485, %v1495
      %v1503 = vadd.f32 %v1486, %v1495
      %v1504 = vadd.f32 %v1487, %v1495
      %v1505 = vadd.f32 %v1488, %v1495
      %v1506 = vadd.f32 %v1489, %v1495
      %v1507 = vadd.f32 %v1490, %v1495
      %v1508 = vadd.f32 %v1491, %v1495
      %v1509 = vadd.f32 %v1492, %v1495
      %v1510 = vadd.f32 %v1493, %v1495
      %v1511 = vadd.f32 %v1494, %v1495
      %v1512 = vmax.f32 %v1496, 0.0
      %v1513 = vmax.f32 %v1497, 0.0
      %v1514 = vmax.f32 %v1498, 0.0
      %v1515 = vmax.f32 %v1499, 0.0
      %v1516 = vmax.f32 %v1500, 0.0
      %v1517 = vmax.f32 %v1501, 0.0
      %v1518 = vmax.f32 %v1502, 0.0
      %v1519 = vmax.f32 %v1503, 0.0
      %v1520 = vmax.f32 %v1504, 0.0
      %v1521 = vmax.f32 %v1505, 0.0
      %v1522 = vmax.f32 %v1506, 0.0
      %v1523 = vmax.f32 %v1507, 0.0
      %v1524 = vmax.f32 %v1508, 0.0
      %v1525 = vmax.f32 %v1509, 0.0
      %v1526 = vmax.f32 %v1510, 0.0
      %v1527 = vmax.f32 %v1511, 0.0
      %v1536 = vrot.slane %v1512, 4
      %v1537 = vrot.slane %v1514, 4
      %v1538 = vrot.slane %v1516, 4
      %v1539 = vrot.slane %v1518, 4
      %v1540 = vrot.slane %v1520, 4
      %v1541 = vrot.slane %v1522, 4
      %v1542 = vrot.slane %v1524, 4
      %v1543 = vrot.slane %v1526, 4
      %1544 = vrot.lane.b32.xlu0 %v1536, 16
      %v1545 = vpop.permute.xlu0 %1544
      %1546 = vrot.lane.b32.xlu0 %v1537, 16
      %v1547 = vpop.permute.xlu0 %1546
      %1548 = vrot.lane.b32.xlu0 %v1538, 16
      %v1549 = vpop.permute.xlu0 %1548
      %1550 = vrot.lane.b32.xlu0 %v1539, 16
      %v1551 = vpop.permute.xlu0 %1550
      %1552 = vrot.lane.b32.xlu0 %v1540, 16
      %v1553 = vpop.permute.xlu0 %1552
      %1554 = vrot.lane.b32.xlu0 %v1541, 16
      %v1555 = vpop.permute.xlu0 %1554
      %1556 = vrot.lane.b32.xlu0 %v1542, 16
      %v1557 = vpop.permute.xlu0 %1556
      %1558 = vrot.lane.b32.xlu0 %v1543, 16
      %v1559 = vpop.permute.xlu0 %1558
      %1576 = vrot.lane.b32.xlu0 %v1513, 32
      %v1577 = vpop.permute.xlu0 %1576
      %1578 = vrot.lane.b32.xlu0 %v1515, 32
      %v1579 = vpop.permute.xlu0 %1578
      %1580 = vrot.lane.b32.xlu0 %v1517, 32
      %v1581 = vpop.permute.xlu0 %1580
      %1582 = vrot.lane.b32.xlu0 %v1519, 32
      %v1583 = vpop.permute.xlu0 %1582
      %1584 = vrot.lane.b32.xlu0 %v1521, 32
      %v1585 = vpop.permute.xlu0 %1584
      %1586 = vrot.lane.b32.xlu0 %v1523, 32
      %v1587 = vpop.permute.xlu0 %1586
      %1588 = vrot.lane.b32.xlu0 %v1525, 32
      %v1589 = vpop.permute.xlu0 %1588
      %1590 = vrot.lane.b32.xlu0 %v1527, 32
      %v1591 = vpop.permute.xlu0 %1590
      %v1600 = vrot.slane %v1513, 4
      %v1601 = vrot.slane %v1515, 4
      %v1602 = vrot.slane %v1517, 4
      %v1603 = vrot.slane %v1519, 4
      %v1604 = vrot.slane %v1521, 4
      %v1605 = vrot.slane %v1523, 4
      %v1606 = vrot.slane %v1525, 4
      %v1607 = vrot.slane %v1527, 4
      %1608 = vrot.lane.b32.xlu0 %v1600, 48
      %v1609 = vpop.permute.xlu0 %1608
      %1610 = vrot.lane.b32.xlu0 %v1601, 48
      %v1611 = vpop.permute.xlu0 %1610
      %1612 = vrot.lane.b32.xlu0 %v1602, 48
      %v1613 = vpop.permute.xlu0 %1612
      %1614 = vrot.lane.b32.xlu0 %v1603, 48
      %v1615 = vpop.permute.xlu0 %1614
      %1616 = vrot.lane.b32.xlu0 %v1604, 48
      %v1617 = vpop.permute.xlu0 %1616
      %1618 = vrot.lane.b32.xlu0 %v1605, 48
      %v1619 = vpop.permute.xlu0 %1618
      %1620 = vrot.lane.b32.xlu0 %v1606, 48
      %v1621 = vpop.permute.xlu0 %1620
      %1622 = vrot.lane.b32.xlu0 %v1607, 48
      %v1623 = vpop.permute.xlu0 %1622
      %vm1632 = vcmask 130048
      %v1633 = vsel %vm1632, %v1512, %v1545
      %v1634 = vsel %vm1632, %v1514, %v1547
      %v1635 = vsel %vm1632, %v1516, %v1549
      %v1636 = vsel %vm1632, %v1518, %v1551
      %v1637 = vsel %vm1632, %v1520, %v1553
      %v1638 = vsel %vm1632, %v1522, %v1555
      %v1639 = vsel %vm1632, %v1524, %v1557
      %v1640 = vsel %vm1632, %v1526, %v1559
      %vm1641 = vcmask 261120
      %v1642 = vsel %vm1641, %v1633, %v1577
      %v1643 = vsel %vm1641, %v1634, %v1579
      %v1644 = vsel %vm1641, %v1635, %v1581
      %v1645 = vsel %vm1641, %v1636, %v1583
      %v1646 = vsel %vm1641, %v1637, %v1585
      %v1647 = vsel %vm1641, %v1638, %v1587
      %v1648 = vsel %vm1641, %v1639, %v1589
      %v1649 = vsel %vm1641, %v1640, %v1591
      %vm1650 = vcmask 392192
      %v1651 = vsel %vm1650, %v1642, %v1609
      %v1652 = vsel %vm1650, %v1643, %v1611
      %v1653 = vsel %vm1650, %v1644, %v1613
      %v1654 = vsel %vm1650, %v1645, %v1615
      %v1655 = vsel %vm1650, %v1646, %v1617
      %v1656 = vsel %vm1650, %v1647, %v1619
      %v1657 = vsel %vm1650, %v1648, %v1621
      %v1658 = vsel %vm1650, %v1649, %v1623
      %vm1659 = vcmask 519168
      %v1660 = vsel %vm1659, %v1651, 0.0
      %v1661 = vrot.slane %v1660, 4
      %v1662 = vadd.f32 %v1660, %v1661
      %v1663 = vrot.slane %v1662, 2
      %v1664 = vadd.f32 %v1662, %v1663
      %v1665 = vrot.slane %v1664, 1
      %v1666 = vadd.f32 %v1664, %v1665
      %v1667 = vsel %vm1659, %v1652, 0.0
      %v1668 = vrot.slane %v1667, 4
      %v1669 = vadd.f32 %v1667, %v1668
      %v1670 = vrot.slane %v1669, 2
      %v1671 = vadd.f32 %v1669, %v1670
      %v1672 = vrot.slane %v1671, 1
      %v1673 = vadd.f32 %v1671, %v1672
      %v1674 = vsel %vm1659, %v1653, 0.0
      %v1675 = vrot.slane %v1674, 4
      %v1676 = vadd.f32 %v1674, %v1675
      %v1677 = vrot.slane %v1676, 2
      %v1678 = vadd.f32 %v1676, %v1677
      %v1679 = vrot.slane %v1678, 1
      %v1680 = vadd.f32 %v1678, %v1679
      %v1681 = vsel %vm1659, %v1654, 0.0
      %v1682 = vrot.slane %v1681, 4
      %v1683 = vadd.f32 %v1681, %v1682
      %v1684 = vrot.slane %v1683, 2
      %v1685 = vadd.f32 %v1683, %v1684
      %v1686 = vrot.slane %v1685, 1
      %v1687 = vadd.f32 %v1685, %v1686
      %v1688 = vsel %vm1659, %v1655, 0.0
      %v1689 = vrot.slane %v1688, 4
      %v1690 = vadd.f32 %v1688, %v1689
      %v1691 = vrot.slane %v1690, 2
      %v1692 = vadd.f32 %v1690, %v1691
      %v1693 = vrot.slane %v1692, 1
      %v1694 = vadd.f32 %v1692, %v1693
      %v1695 = vsel %vm1659, %v1656, 0.0
      %v1696 = vrot.slane %v1695, 4
      %v1697 = vadd.f32 %v1695, %v1696
      %v1698 = vrot.slane %v1697, 2
      %v1699 = vadd.f32 %v1697, %v1698
      %v1700 = vrot.slane %v1699, 1
      %v1701 = vadd.f32 %v1699, %v1700
      %v1702 = vsel %vm1659, %v1657, 0.0
      %v1703 = vrot.slane %v1702, 4
      %v1704 = vadd.f32 %v1702, %v1703
      %v1705 = vrot.slane %v1704, 2
      %v1706 = vadd.f32 %v1704, %v1705
      %v1707 = vrot.slane %v1706, 1
      %v1708 = vadd.f32 %v1706, %v1707
      %v1709 = vsel %vm1659, %v1658, 0.0
      %v1710 = vrot.slane %v1709, 4
      %v1711 = vadd.f32 %v1709, %v1710
      %v1712 = vrot.slane %v1711, 2
      %v1713 = vadd.f32 %v1711, %v1712
      %v1714 = vrot.slane %v1713, 1
      %v1715 = vadd.f32 %v1713, %v1714
      %v1716 = vrcp.pop 4.0
      %v1717 = vmul.f32 4.0, %v1716
      %v1718 = vsub.f32 1.0, %v1717
      %v1719 = vmul.f32 %v1716, %v1718
      %v1720 = vadd.f32 %v1716, %v1719
      %vm1721 = vweird.f32 %v1716
      %v1722 = vsel %vm1721, %v1716, %v1720
      %v1723 = vmul.f32 %v1666, %v1722
      %v1724 = vmul.f32 %v1673, %v1722
      %v1725 = vmul.f32 %v1680, %v1722
      %v1726 = vmul.f32 %v1687, %v1722
      %v1727 = vmul.f32 %v1694, %v1722
      %v1728 = vmul.f32 %v1701, %v1722
      %v1729 = vmul.f32 %v1708, %v1722
      %v1730 = vmul.f32 %v1715, %v1722
      %v1731 = vld [vmem:[%s339] sm:$0xff]
      %v1732 = vlaneseq
      %v1733 = vand.u32 %v1732, 127
      %1734 = vset.pattern.permute.xlu0 0
      %1735 = vperm.xlu0 %1734, %v1731
      %v1736 = vpop.permute.xlu0 %1735
      %vm1737 = vcmp.eq.s32.totalorder %v1733, %v1736
      %v1738 = vsel %vm1737, 1, 0
      %v1739 = vcvt.s32.f32 %v1738
      %v1740 = vadd.f32 %v1739, 0.0
      %v1741 = vadd.s32 %v1731, 10
      %1742 = vset.pattern.permute.xlu0 1
      %1743 = vperm.xlu0 %1742, %v1741
      %v1744 = vpop.permute.xlu0 %1743
      %vm1745 = vcmp.eq.s32.totalorder %v1733, %v1744
      %v1746 = vsel %vm1745, 1, 0
      %v1747 = vcvt.s32.f32 %v1746
      %v1748 = vadd.f32 %v1740, %v1747
      %v1749 = vadd.s32 %v1731, 17
      %1750 = vset.pattern.permute.xlu0 2
      %1751 = vperm.xlu0 %1750, %v1749
      %v1752 = vpop.permute.xlu0 %1751
      %vm1753 = vcmp.eq.s32.totalorder %v1733, %v1752
      %v1754 = vsel %vm1753, 1, 0
      %v1755 = vcvt.s32.f32 %v1754
      %v1756 = vadd.f32 %v1748, %v1755
      %v1757 = vpack.c.bf16 %v1723, %v1723
      %v1758 = vpack.c.bf16 %v1724, %v1724
      %v1759 = vpack.c.bf16 %v1725, %v1725
      %v1760 = vpack.c.bf16 %v1726, %v1726
      %v1761 = vpack.c.bf16 %v1727, %v1727
      %v1762 = vpack.c.bf16 %v1728, %v1728
      %v1763 = vpack.c.bf16 %v1729, %v1729
      %v1764 = vpack.c.bf16 %v1730, %v1730
      %v1765 = vld [vmem:[%s4] sm:$0xf]
      %v1766 = vld [vmem:[%s4 + $0x4] sm:$0xf]
      %v1767 = vld [vmem:[%s4 + $0x8] sm:$0xf]
      %v1768 = vld [vmem:[%s4 + $0xc] sm:$0xf]
      %v1769 = vld [vmem:[%s4 + $0x10] sm:$0xf]
      %v1770 = vld [vmem:[%s4 + $0x14] sm:$0xf]
      %v1771 = vld [vmem:[%s4 + $0x18] sm:$0xf]
      %v1772 = vld [vmem:[%s4 + $0x1c] sm:$0xf]
      %v1773 = vpack.c.bf16 %v1756, %v1756
      %v1774 = vld [vmem:[%s5] sm:$0xf]
      %v1775 = vld [vmem:[%s5 + $0x4] sm:$0xf]
      %v1776 = vld [vmem:[%s5 + $0x8] sm:$0x7]
      %v1780 = vunpack.c.l.b16 %v1774
      %v1781 = vunpack.c.l.b16 %v1775
      %v1782 = vunpack.c.l.b16 %v1776
      %v1783 = vpack.c.b16 %v1781, %v1780
      %v1784 = vpack.c.b16 %v1782, %v1782
      %vm1786 = vcmask 179200
      %v1788 = vsel %vm1786, %v1773, 0
      %vm1790 = vcmask 1042432
      %v1792 = vsel %vm1790, %v1784, 0
      %1794 = vmatpush.bf16.msra.mxu0 0
      %1795 = vmatpush.bf16.msra.mxu0 0
      %1796 = vmatpush.bf16.msra.mxu0 0
      %1797 = vmatpush.bf16.msra.mxu0 0
      %1798 = vmatpush.bf16.msra.mxu0 0
      %1799 = vmatpush.bf16.msra.mxu0 0
      %1800 = vmatpush.bf16.msra.mxu0 %v1792
      %1801 = vmatpush.bf16.msra.mxu0 %v1783
      %1802 = vmatmul.bf16.gmra.mxu0 %v1788
      %v1803 = vpop.f32.mrf.mxu0
      %v1804 = vadd.f32 0.0, %v1803
      %v1805 = vpop.f32.mrf.mxu0
      %1806 = vdwg.mxu0
      %v1815 = vunpack.c.l.b16 %v1757
      %v1816 = vunpack.c.l.b16 %v1758
      %v1817 = vunpack.c.l.b16 %v1759
      %v1818 = vunpack.c.l.b16 %v1760
      %v1819 = vunpack.c.l.b16 %v1761
      %v1820 = vunpack.c.l.b16 %v1762
      %v1821 = vunpack.c.l.b16 %v1763
      %v1822 = vunpack.c.l.b16 %v1764
      %vm1823 = vcmask 1041409
      %v1824 = vsel %vm1823, %v1816, %v1815
      %vm1825 = vcmask 1042434
      %v1826 = vsel %vm1825, %v1817, %v1824
      %vm1827 = vcmask 1043459
      %v1828 = vsel %vm1827, %v1818, %v1826
      %vm1829 = vcmask 1044484
      %v1830 = vsel %vm1829, %v1819, %v1828
      %vm1831 = vcmask 1045509
      %v1832 = vsel %vm1831, %v1820, %v1830
      %vm1833 = vcmask 1046534
      %v1834 = vsel %vm1833, %v1821, %v1832
      %vm1835 = vcmask 1047559
      %v1836 = vsel %vm1835, %v1822, %v1834
      %v1837 = vpack.c.b16 %v1836, %v1836
      %v1846 = vunpack.c.l.b16 %v1765
      %v1847 = vunpack.c.l.b16 %v1766
      %v1848 = vunpack.c.l.b16 %v1767
      %v1849 = vunpack.c.l.b16 %v1768
      %v1850 = vunpack.c.l.b16 %v1769
      %v1851 = vunpack.c.l.b16 %v1770
      %v1852 = vunpack.c.l.b16 %v1771
      %v1853 = vunpack.c.l.b16 %v1772
      %v1854 = vpack.c.b16 %v1847, %v1846
      %v1855 = vpack.c.b16 %v1849, %v1848
      %v1856 = vpack.c.b16 %v1851, %v1850
      %v1857 = vpack.c.b16 %v1853, %v1852
      %vm1862 = vcmask 523264
      %v1864 = vsel %vm1862, %v1837, 0
      %1866 = vmatpush.bf16.msra.mxu0 0
      %1867 = vmatpush.bf16.msra.mxu0 0
      %1868 = vmatpush.bf16.msra.mxu0 0
      %1869 = vmatpush.bf16.msra.mxu0 0
      %1870 = vmatpush.bf16.msra.mxu0 %v1857
      %1871 = vmatpush.bf16.msra.mxu0 %v1856
      %1872 = vmatpush.bf16.msra.mxu0 %v1855
      %1873 = vmatpush.bf16.msra.mxu0 %v1854
      %1874 = vmatmul.bf16.gmra.mxu0 %v1864
      %v1875 = vpop.f32.mrf.mxu0
      %v1876 = vadd.f32 %v1804, %v1875
      %v1877 = vpop.f32.mrf.mxu0
      %1878 = vdwg.mxu0
      %v1879 = vperm.slane %v344, 2
      %v1880 = vadd.f32 %v1876, %v1879
      %v1881 = vmax.f32 %v1880, 0.0
      %v1882 = vpack.c.bf16 %v1881, %v1881
      %v1883 = vld [vmem:[%s6] sm:$0xf]
      %v1884 = vld [vmem:[%s6 + $0x4] sm:$0xf]
      %v1885 = vld [vmem:[%s6 + $0x8] sm:$0xf]
      %v1886 = vld [vmem:[%s6 + $0xc] sm:$0xf]
      %v1887 = vperm.slane %v344, 3
      %v1892 = vunpack.c.l.b16 %v1883
      %v1893 = vunpack.c.l.b16 %v1884
      %v1894 = vunpack.c.l.b16 %v1885
      %v1895 = vunpack.c.l.b16 %v1886
      %v1896 = vpack.c.b16 %v1893, %v1892
      %v1897 = vpack.c.b16 %v1895, %v1894
      %v1901 = vsel %vm1641, %v1882, 0
      %1903 = vmatpush.bf16.msra.mxu0 0
      %1904 = vmatpush.bf16.msra.mxu0 0
      %1905 = vmatpush.bf16.msra.mxu0 0
      %1906 = vmatpush.bf16.msra.mxu0 0
      %1907 = vmatpush.bf16.msra.mxu0 0
      %1908 = vmatpush.bf16.msra.mxu0 0
      %1909 = vmatpush.bf16.msra.mxu0 %v1897
      %1910 = vmatpush.bf16.msra.mxu0 %v1896
      %1911 = vmatmul.bf16.gmra.mxu0 %v1901
      %v1912 = vpop.f32.mrf.mxu0
      %v1913 = vadd.f32 %v1887, %v1912
      %v1914 = vpop.f32.mrf.mxu0
      %1915 = vdwg.mxu0
      %v1916 = vmax.f32 %v1913, 0.0
      %v1917 = vld [vmem:[%s7] sm:$0x1]
      %v1918 = vpack.c.bf16 %v1916, %v1916
      %1920 = vset.pattern.permute.xlu0 0
      %1921 = vperm.xlu0 %1920, %v344
      %v1922 = vpop.permute.xlu0 %1921
      %v1923 = vrot.slane %v1922, 4
      %v1926 = vsel %vm1632, %v1917, 0
      %v1929 = vsel %vm1632, %v1918, 0
      %1931 = vmatpush.bf16.xpose.msra.mxu0 0
      %1932 = vmatpush.bf16.xpose.msra.mxu0 0
      %1933 = vmatpush.bf16.xpose.msra.mxu0 0
      %1934 = vmatpush.bf16.xpose.msra.mxu0 0
      %1935 = vmatpush.bf16.xpose.msra.mxu0 0
      %1936 = vmatpush.bf16.xpose.msra.mxu0 0
      %1937 = vmatpush.bf16.xpose.msra.mxu0 0
      %1938 = vmatpush.bf16.xpose.msra.mxu0 %v1929
      %1939 = vmatmul.bf16.gmra.mxu0 %v1926
      %v1940 = vpop.f32.mrf.mxu0
      %v1941 = vadd.f32 %v1923, %v1940
      %v1942 = vpop.f32.mrf.mxu0
      %1943 = vdwg.mxu0
      %v1944 = vsub.f32 0.0, %v1941
      %v1945 = vmul.f32 %v1944, 1.442695
      %v1946 = vpow.pop %v1945
      %v1947 = vadd.f32 %v1946, 1.0
      %v1948 = vrcp.pop %v1947
      %vm1949 = vcmask 57344
      %1950 = vst.msk [vmem:[%s342] sm:$0x1] %vm1949, %v1948
      %p1951 = scmp.lt.s32.totalorder %s20, 1
      %s1952 = scalar_select %p1951, %s20, 1
      %s1953 = scalar_lea.vmem %s9, %s1952
      // Predicated region
      $region57: #{cnn_forward.1} parent=55 // pred_check
        %p1954 = pneg %p237
      $region58: #{cnn_forward.1} parent=55 // pred_check_branch
        %1956 = sbr.rel (%p1954) target = $region60
      $region59: #{cnn_forward.1} parent=55 // pred_region
        _
      $region60: #{cnn_forward.1} parent=55 // pred_fallthru
        _
    $region56: #{cnn_forward.1} parent=5 // pred_fallthru
      _
    %p1957 = scmp.le.s32.totalorder 2, %s15
    // Predicated region
    $region61: #{cnn_forward.1} parent=5 // pred_check
      %p1958 = pneg %p1957
    $region62: #{cnn_forward.1} parent=5 // pred_check_branch
      %1960 = sbr.rel (%p1958) target = $region64
    $region63: #{cnn_forward.1} parent=5 // pred_region
      %s1961 = ssub.s32 %s15, 2
      // Predicated region
      $region65: #{cnn_forward.1} parent=63 // pred_check
        %p1962 = pneg %p243
      $region66: #{cnn_forward.1} parent=63 // pred_check_branch
        %1964 = sbr.rel (%p1962) target = $region68
      $region67: #{cnn_forward.1} parent=63 // pred_region
        %p1965 = scmp.lt.s32.totalorder %s21, 1
        %s1966 = scalar_select %p1965, %s21, 1
        %s1967 = scalar_lea.vmem %s9, %s1966
      $region68: #{cnn_forward.1} parent=63 // pred_fallthru
        _
    $region64: #{cnn_forward.1} parent=5 // pred_fallthru
      _
  $region6: #{cnn_forward.1} parent=0 // loop_footer
    %s19 = sadd.s32 1, %s15
  $region7: #{cnn_forward.1} parent=0 // loop_footer_branch
    %14 = sbr.rel target = $region3
  $region8: #{cnn_forward.1} parent=0 // loop_exit
    _

</llo_original>
